<compile_context>
chip_gen: v7x
topology: tpu7x:2x2x1
jax: 0.10.0
libtpu: 0.0.40
codegen_flags: <defaults>
</compile_context>

<pallas_src>
import jax
import jax.numpy as jnp
from jax.experimental import pallas as pl
from jax.experimental.pallas import tpu as pltpu


def _rgcn_kernel(node_ref, edge_ref, srcf_ref, srcr_ref, sfwd_ref, srev_ref,
                 wrb_ref, wbasis_ref, wself_ref, bself_ref, out_ref):
    """One edge block (both graph directions) per grid step.

    The (N, out_pad) f32 output block is resident across the edge grid axis and
    doubles as the accumulator (init with self-loop at k==0, ReLU at the end).
    """
    k = pl.program_id(0)
    num_basis = wrb_ref.shape[1] // 2
    out_pad = wself_ref.shape[1]

    # ---- init: self-loop term W_self(node) + b, computed once ---------------
    @pl.when(k == 0)
    def _():
        out_ref[...] = (
            jnp.dot(node_ref[...], wself_ref[...],
                    preferred_element_type=jnp.float32)
            + bself_ref[...])

    # ---- fused coefficient matmul: [a_fwd | a_rev] = edge @ [Wrb | Wrb_inv] --
    a_both = jnp.dot(edge_ref[...], wrb_ref[...],
                     preferred_element_type=jnp.float32)            # (te, 2B) f32
    coef = jnp.concatenate([a_both[:, :num_basis], a_both[:, num_basis:]],
                           axis=0)                                  # (2*te, B) f32

    # ---- one wide basis matmul on stacked (fwd; rev) source rows ------------
    src_cat = jnp.concatenate([srcf_ref[...], srcr_ref[...]], axis=0)   # (2*te, in) bf16
    p = jnp.dot(src_cat, wbasis_ref[...],
                preferred_element_type=jnp.float32)                 # (2*te, B*out_pad)

    # ---- weighted basis combination -> per-edge messages --------------------
    # p slices are 128-lane aligned; B is tiny, so the loop is statically unrolled.
    msg = coef[:, 0:1] * p[:, 0:out_pad]
    for b in range(1, num_basis):
        msg = msg + coef[:, b:b + 1] * p[:, b * out_pad:(b + 1) * out_pad]

    # ---- fused mean aggregation for both directions (one MXU matmul) --------
    s_cat = jnp.concatenate([sfwd_ref[...], srev_ref[...]], axis=1)     # (N, 2*te) bf16
    out_ref[...] += jnp.dot(s_cat, msg.astype(jnp.bfloat16),
                            preferred_element_type=jnp.float32)

    # ---- finalize: ReLU ------------------------------------------------------
    @pl.when(k == pl.num_programs(0) - 1)
    def _():
        out_ref[...] = jnp.maximum(out_ref[...], 0.0)


def rgcn_layer_forward(node_embs, edge_embs, src, dst, params, *, edge_tile=128):
    """Pallas RGCNLayer forward (eval mode: dropout = identity).

    node_embs: (N, in_dim) f32, edge_embs: (E, in_dim) f32,
    src/dst: (E,) int32 endpoints; forward edge e goes src[e] -> dst[e].
    """
    N, in_dim = node_embs.shape
    E = edge_embs.shape[0]
    num_basis = params["W_rb_T"].shape[1]
    out_dim = params["W_self_T"].shape[1]
    out_pad = ((out_dim + 127) // 128) * 128           # lane-dense output width

    te = E if E <= edge_tile else edge_tile            # edge reduction tile
    assert E % te == 0, "E must be a multiple of the edge tile"

    # ---- host-side glue ------------------------------------------------------
    # TODO(synk): fuse these gathers into the kernel at scale (extra HBM traffic).
    src_fwd = node_embs[src]                           # forward-graph sources
    src_rev = node_embs[dst]                           # reverse-graph sources

    def mean_matrix(dst_ids):
        # S[v, e] = 1/deg(v) if edge e points at node v else 0  (deg 0 -> zeros).
        one_hot = (dst_ids[None, :] == jnp.arange(N)[:, None]).astype(jnp.float32)
        deg = one_hot.sum(axis=1, keepdims=True)
        return one_hot / jnp.maximum(deg, 1.0)

    S_fwd = mean_matrix(dst)                           # forward destinations
    S_rev = mean_matrix(src)                           # reverse destinations

    # ---- fused / lane-padded weights (one-time host prep) --------------------
    W_rb_cat = jnp.concatenate([params["W_rb_T"], params["W_rb_inv_T"]], axis=1)
    W_basis_pad = jnp.pad(params["W_basis3"],
                          ((0, 0), (0, 0), (0, out_pad - out_dim)))   # (B,in,out_pad)
    W_basis_flat = jnp.transpose(W_basis_pad, (1, 0, 2)).reshape(
        in_dim, num_basis * out_pad)                                   # (in, B*out_pad)
    W_self_pad = jnp.pad(params["W_self_T"], ((0, 0), (0, out_pad - out_dim)))
    b_self_pad = jnp.pad(params["b_self"], ((0, 0), (0, out_pad - out_dim)))

    bf16 = jnp.bfloat16
    args = (node_embs.astype(bf16), edge_embs.astype(bf16),
            src_fwd.astype(bf16), src_rev.astype(bf16),
            S_fwd.astype(bf16), S_rev.astype(bf16),
            W_rb_cat.astype(bf16), W_basis_flat.astype(bf16),
            W_self_pad.astype(bf16), b_self_pad.astype(jnp.float32))

    in_specs = [
        pl.BlockSpec((N, in_dim), lambda k: (0, 0)),               # node_embs
        pl.BlockSpec((te, in_dim), lambda k: (k, 0)),              # edge_embs block
        pl.BlockSpec((te, in_dim), lambda k: (k, 0)),              # src_fwd block
        pl.BlockSpec((te, in_dim), lambda k: (k, 0)),              # src_rev block
        pl.BlockSpec((N, te), lambda k: (0, k)),                   # S_fwd columns
        pl.BlockSpec((N, te), lambda k: (0, k)),                   # S_rev columns
        pl.BlockSpec((in_dim, 2 * num_basis), lambda k: (0, 0)),   # [Wrb|Wrb_inv]
        pl.BlockSpec((in_dim, num_basis * out_pad), lambda k: (0, 0)),
        pl.BlockSpec((in_dim, out_pad), lambda k: (0, 0)),         # W_self
        pl.BlockSpec((1, out_pad), lambda k: (0, 0)),              # b_self
    ]
    out_specs = pl.BlockSpec((N, out_pad), lambda k: (0, 0))       # resident accumulator

    # VMEM budget from the actual (double-buffered) block footprint, capped well
    # below v7x's 64 MiB physical VMEM.
    block_bytes = 2 * (N * in_dim + 3 * te * in_dim + 2 * N * te
                       + in_dim * (2 * num_basis + num_basis * out_pad + out_pad))
    block_bytes += 4 * (out_pad + N * out_pad)
    vmem_limit = int(min(48 << 20, max(16 << 20, 2 * block_bytes + (4 << 20))))

    out = pl.pallas_call(
        _rgcn_kernel,
        out_shape=jax.ShapeDtypeStruct((N, out_pad), jnp.float32),
        grid=(E // te,),
        in_specs=in_specs,
        out_specs=out_specs,
        compiler_params=pltpu.CompilerParams(
            dimension_semantics=("arbitrary",),   # edge axis reduces into resident output
            vmem_limit_bytes=vmem_limit),
    )(*args)
    return out[:, :out_dim]


def rgcn_layer_reference(node_embs, edge_embs, src, dst, params):
    """Pure-JAX fp32 reference mirroring the PyTorch/DGL semantics (eval mode)."""
    N = node_embs.shape[0]
    a_fwd = edge_embs @ params["W_rb_T"]
    a_rev = edge_embs @ params["W_rb_inv_T"]
    Wr_fwd = jnp.einsum("eb,bio->eio", a_fwd, params["W_basis3"])
    Wr_rev = jnp.einsum("eb,bio->eio", a_rev, params["W_basis3"])
    m_fwd = jnp.einsum("ei,eio->eo", node_embs[src], Wr_fwd)
    m_rev = jnp.einsum("ei,eio->eo", node_embs[dst], Wr_rev)

    def seg_mean(msgs, dst_ids):
        summed = jax.ops.segment_sum(msgs, dst_ids, num_segments=N)
        cnt = jax.ops.segment_sum(jnp.ones((msgs.shape[0],), jnp.float32),
                                  dst_ids, num_segments=N)
        return summed / jnp.maximum(cnt, 1.0)[:, None]

    h_fwd = seg_mean(m_fwd, dst)
    h_rev = seg_mean(m_rev, src)
    h_self = node_embs @ params["W_self_T"] + params["b_self"]
    return jnp.maximum(h_fwd + h_rev + h_self, 0.0)


def init_params(key, in_dim, out_dim, num_basis):
    k1, k2, k3, k4, k5 = jax.random.split(key, 5)
    # nn.Linear weights ~ U(-1/sqrt(in), 1/sqrt(in)); W_basis xavier_uniform(relu gain).
    lin_bound = 1.0 / jnp.sqrt(in_dim)
    W_rb = jax.random.uniform(k1, (num_basis, in_dim), jnp.float32,
                              -lin_bound, lin_bound)
    W_rb_inv = jax.random.uniform(k2, (num_basis, in_dim), jnp.float32,
                                  -lin_bound, lin_bound)
    gain = jnp.sqrt(2.0)
    xav = gain * jnp.sqrt(6.0 / (num_basis + in_dim * out_dim))
    W_basis = jax.random.uniform(k3, (num_basis, in_dim * out_dim), jnp.float32,
                                 -xav, xav)
    W_self = jax.random.uniform(k4, (out_dim, in_dim), jnp.float32,
                                -lin_bound, lin_bound)
    b_self = jax.random.uniform(k5, (out_dim,), jnp.float32,
                                -lin_bound, lin_bound)
    return {
        "W_rb_T": W_rb.T,                                         # (in, basis)
        "W_rb_inv_T": W_rb_inv.T,                                 # (in, basis)
        "W_basis3": W_basis.reshape(num_basis, in_dim, out_dim),  # == torch .view
        "W_self_T": W_self.T,                                     # (in, out)
        "b_self": b_self.reshape(1, out_dim),                     # (1, out)
    }


if __name__ == "__main__":
    in_dim, out_dim, num_basis = 32, 16, 4
    N, E = 64, 256    # small, but large enough for a non-degenerate edge grid

    key = jax.random.PRNGKey(0)
    k_node, k_edge, k_src, k_dst, k_param = jax.random.split(key, 5)

    node_embs = jax.random.normal(k_node, (N, in_dim), jnp.float32)
    edge_embs = jax.random.normal(k_edge, (E, in_dim), jnp.float32)
    src = jax.random.randint(k_src, (E,), 0, N, jnp.int32)
    dst = jax.random.randint(k_dst, (E,), 0, N, jnp.int32)
    params = init_params(k_param, in_dim, out_dim, num_basis)

    out = rgcn_layer_forward(node_embs, edge_embs, src, dst, params)
    out = jax.block_until_ready(out)

    ref = rgcn_layer_reference(node_embs, edge_embs, src, dst, params)
    assert out.shape == (N, out_dim)
    # bf16 MXU operands (fp32 accumulation) -> compare against the pure-fp32
    # reference with a correspondingly relaxed tolerance.
    assert jnp.allclose(out, ref, atol=5e-2, rtol=5e-2), \
        f"mismatch vs reference (max abs err {float(jnp.max(jnp.abs(out - ref)))})"

    print("KERNEL_OK")
</pallas_src>

<mosaic_0001>
module attributes {stable_mosaic.version = 11 : i64} {
  func.func @_rgcn_kernel(%arg0: i32, %arg1: memref<64x32xbf16, #tpu.memory_space<vmem>>, %arg2: memref<128x32xbf16, #tpu.memory_space<vmem>>, %arg3: memref<128x32xbf16, #tpu.memory_space<vmem>>, %arg4: memref<128x32xbf16, #tpu.memory_space<vmem>>, %arg5: memref<64x128xbf16, #tpu.memory_space<vmem>>, %arg6: memref<64x128xbf16, #tpu.memory_space<vmem>>, %arg7: memref<32x8xbf16, #tpu.memory_space<vmem>>, %arg8: memref<32x512xbf16, #tpu.memory_space<vmem>>, %arg9: memref<32x128xbf16, #tpu.memory_space<vmem>>, %arg10: memref<1x128xf32, #tpu.memory_space<vmem>>, %arg11: memref<64x128xf32, #tpu.memory_space<vmem>>) attributes {dimension_semantics = [#tpu.dimension_semantics<arbitrary>], iteration_bounds = array<i64: 2>, scalar_prefetch = 0 : i64, scratch_operands = 0 : i64, tpu.core_type = #tpu.core_type<tc>, window_params = [{pipeline_mode = #tpu.pipeline_mode<synchronous>, transform_indices = @transform_0, window_bounds = array<i64: 64, 32>}, {transform_indices = @transform_1, window_bounds = array<i64: 128, 32>}, {transform_indices = @transform_2, window_bounds = array<i64: 128, 32>}, {transform_indices = @transform_3, window_bounds = array<i64: 128, 32>}, {transform_indices = @transform_4, window_bounds = array<i64: 64, 128>}, {transform_indices = @transform_5, window_bounds = array<i64: 64, 128>}, {pipeline_mode = #tpu.pipeline_mode<synchronous>, transform_indices = @transform_6, window_bounds = array<i64: 32, 8>}, {pipeline_mode = #tpu.pipeline_mode<synchronous>, transform_indices = @transform_7, window_bounds = array<i64: 32, 512>}, {pipeline_mode = #tpu.pipeline_mode<synchronous>, transform_indices = @transform_8, window_bounds = array<i64: 32, 128>}, {pipeline_mode = #tpu.pipeline_mode<synchronous>, transform_indices = @transform_9, window_bounds = array<i64: 1, 128>}, {pipeline_mode = #tpu.pipeline_mode<synchronous>, transform_indices = @transform_10, window_bounds = array<i64: 64, 128>}]} {
    %c0_i32 = arith.constant 0 : i32
    %0 = arith.cmpi eq, %arg0, %c0_i32 : i32
    %1 = arith.extui %0 : i1 to i32
    %c0_i32_0 = arith.constant 0 : i32
    %2 = arith.cmpi ne, %1, %c0_i32_0 : i32
    scf.if %2 {
      %c0_21 = arith.constant 0 : index
      %c0_22 = arith.constant 0 : index
      %44 = vector.load %arg1[%c0_21, %c0_22] : memref<64x32xbf16, #tpu.memory_space<vmem>>, vector<64x32xbf16>
      %c0_23 = arith.constant 0 : index
      %c0_24 = arith.constant 0 : index
      %45 = vector.load %arg9[%c0_23, %c0_24] : memref<32x128xbf16, #tpu.memory_space<vmem>>, vector<32x128xbf16>
      %cst_25 = arith.constant dense<0.000000e+00> : vector<64x128xf32>
      %46 = tpu.matmul %44, %45, %cst_25 {dimension_numbers = #tpu.dot_dimension_numbers<[1], [0], [0], [1], [0, 0, 1, 1], [], []>} : vector<64x32xbf16>, vector<32x128xbf16>, vector<64x128xf32> -> vector<64x128xf32>
      %c0_26 = arith.constant 0 : index
      %c0_27 = arith.constant 0 : index
      %47 = vector.load %arg10[%c0_26, %c0_27] : memref<1x128xf32, #tpu.memory_space<vmem>>, vector<1x128xf32>
      %48 = vector.broadcast %47 : vector<1x128xf32> to vector<64x128xf32>
      %49 = arith.addf %46, %48 : vector<64x128xf32>
      %c0_28 = arith.constant 0 : index
      %c0_29 = arith.constant 0 : index
      %50 = vector.load %arg11[%c0_28, %c0_29] : memref<64x128xf32, #tpu.memory_space<vmem>>, vector<64x128xf32>
      tpu.vector_store %arg11[%c0_28, %c0_29], %49 {strides = array<i32>} : memref<64x128xf32, #tpu.memory_space<vmem>>, vector<64x128xf32>,
    } else {
    }
    %c0 = arith.constant 0 : index
    %c0_1 = arith.constant 0 : index
    %3 = vector.load %arg2[%c0, %c0_1] : memref<128x32xbf16, #tpu.memory_space<vmem>>, vector<128x32xbf16>
    %c0_2 = arith.constant 0 : index
    %c0_3 = arith.constant 0 : index
    %4 = vector.load %arg7[%c0_2, %c0_3] : memref<32x8xbf16, #tpu.memory_space<vmem>>, vector<32x8xbf16>
    %cst = arith.constant dense<0.000000e+00> : vector<128x8xf32>
    %5 = tpu.matmul %3, %4, %cst {dimension_numbers = #tpu.dot_dimension_numbers<[1], [0], [0], [1], [0, 0, 1, 1], [], []>} : vector<128x32xbf16>, vector<32x8xbf16>, vector<128x8xf32> -> vector<128x8xf32>
    %6 = vector.extract_strided_slice %5 {offsets = [0, 0], sizes = [128, 4], strides = [1, 1]} : vector<128x8xf32> to vector<128x4xf32>
    %7 = vector.extract_strided_slice %5 {offsets = [0, 4], sizes = [128, 4], strides = [1, 1]} : vector<128x8xf32> to vector<128x4xf32>
    %8 = tpu.concatenate %6, %7 in 0 : vector<128x4xf32>, vector<128x4xf32> -> vector<256x4xf32>
    %c0_4 = arith.constant 0 : index
    %c0_5 = arith.constant 0 : index
    %9 = vector.load %arg3[%c0_4, %c0_5] : memref<128x32xbf16, #tpu.memory_space<vmem>>, vector<128x32xbf16>
    %c0_6 = arith.constant 0 : index
    %c0_7 = arith.constant 0 : index
    %10 = vector.load %arg4[%c0_6, %c0_7] : memref<128x32xbf16, #tpu.memory_space<vmem>>, vector<128x32xbf16>
    %11 = tpu.concatenate %9, %10 in 0 : vector<128x32xbf16>, vector<128x32xbf16> -> vector<256x32xbf16>
    %c0_8 = arith.constant 0 : index
    %c0_9 = arith.constant 0 : index
    %12 = vector.load %arg8[%c0_8, %c0_9] : memref<32x512xbf16, #tpu.memory_space<vmem>>, vector<32x512xbf16>
    %cst_10 = arith.constant dense<0.000000e+00> : vector<256x512xf32>
    %13 = tpu.matmul %11, %12, %cst_10 {dimension_numbers = #tpu.dot_dimension_numbers<[1], [0], [0], [1], [0, 0, 1, 1], [], []>} : vector<256x32xbf16>, vector<32x512xbf16>, vector<256x512xf32> -> vector<256x512xf32>
    %14 = vector.extract_strided_slice %8 {offsets = [0, 0], sizes = [256, 1], strides = [1, 1]} : vector<256x4xf32> to vector<256x1xf32>
    %15 = vector.extract_strided_slice %13 {offsets = [0, 0], sizes = [256, 128], strides = [1, 1]} : vector<256x512xf32> to vector<256x128xf32>
    %16 = vector.broadcast %14 : vector<256x1xf32> to vector<256x128xf32>
    %17 = arith.mulf %16, %15 : vector<256x128xf32>
    %18 = vector.extract_strided_slice %8 {offsets = [0, 1], sizes = [256, 1], strides = [1, 1]} : vector<256x4xf32> to vector<256x1xf32>
    %19 = vector.extract_strided_slice %13 {offsets = [0, 128], sizes = [256, 128], strides = [1, 1]} : vector<256x512xf32> to vector<256x128xf32>
    %20 = vector.broadcast %18 : vector<256x1xf32> to vector<256x128xf32>
    %21 = arith.mulf %20, %19 : vector<256x128xf32>
    %22 = arith.addf %17, %21 : vector<256x128xf32>
    %23 = vector.extract_strided_slice %8 {offsets = [0, 2], sizes = [256, 1], strides = [1, 1]} : vector<256x4xf32> to vector<256x1xf32>
    %24 = vector.extract_strided_slice %13 {offsets = [0, 256], sizes = [256, 128], strides = [1, 1]} : vector<256x512xf32> to vector<256x128xf32>
    %25 = vector.broadcast %23 : vector<256x1xf32> to vector<256x128xf32>
    %26 = arith.mulf %25, %24 : vector<256x128xf32>
    %27 = arith.addf %22, %26 : vector<256x128xf32>
    %28 = vector.extract_strided_slice %8 {offsets = [0, 3], sizes = [256, 1], strides = [1, 1]} : vector<256x4xf32> to vector<256x1xf32>
    %29 = vector.extract_strided_slice %13 {offsets = [0, 384], sizes = [256, 128], strides = [1, 1]} : vector<256x512xf32> to vector<256x128xf32>
    %30 = vector.broadcast %28 : vector<256x1xf32> to vector<256x128xf32>
    %31 = arith.mulf %30, %29 : vector<256x128xf32>
    %32 = arith.addf %27, %31 : vector<256x128xf32>
    %c0_11 = arith.constant 0 : index
    %c0_12 = arith.constant 0 : index
    %33 = vector.load %arg5[%c0_11, %c0_12] : memref<64x128xbf16, #tpu.memory_space<vmem>>, vector<64x128xbf16>
    %c0_13 = arith.constant 0 : index
    %c0_14 = arith.constant 0 : index
    %34 = vector.load %arg6[%c0_13, %c0_14] : memref<64x128xbf16, #tpu.memory_space<vmem>>, vector<64x128xbf16>
    %35 = tpu.concatenate %33, %34 in 1 : vector<64x128xbf16>, vector<64x128xbf16> -> vector<64x256xbf16>
    %c0_15 = arith.constant 0 : index
    %c0_16 = arith.constant 0 : index
    %36 = vector.load %arg11[%c0_15, %c0_16] : memref<64x128xf32, #tpu.memory_space<vmem>>, vector<64x128xf32>
    %37 = arith.truncf %32 : vector<256x128xf32> to vector<256x128xbf16>
    %cst_17 = arith.constant dense<0.000000e+00> : vector<64x128xf32>
    %38 = tpu.matmul %35, %37, %cst_17 {dimension_numbers = #tpu.dot_dimension_numbers<[1], [0], [0], [1], [0, 0, 1, 1], [], []>} : vector<64x256xbf16>, vector<256x128xbf16>, vector<64x128xf32> -> vector<64x128xf32>
    %39 = arith.addf %36, %38 : vector<64x128xf32>
    %c0_18 = arith.constant 0 : index
    %c0_19 = arith.constant 0 : index
    %40 = vector.load %arg11[%c0_18, %c0_19] : memref<64x128xf32, #tpu.memory_space<vmem>>, vector<64x128xf32>
    tpu.vector_store %arg11[%c0_18, %c0_19], %39 {strides = array<i32>} : memref<64x128xf32, #tpu.memory_space<vmem>>, vector<64x128xf32>,
    %c1_i32 = arith.constant 1 : i32
    %41 = arith.cmpi eq, %arg0, %c1_i32 : i32
    %42 = arith.extui %41 : i1 to i32
    %c0_i32_20 = arith.constant 0 : i32
    %43 = arith.cmpi ne, %42, %c0_i32_20 : i32
    scf.if %43 {
      %c0_21 = arith.constant 0 : index
      %c0_22 = arith.constant 0 : index
      %44 = vector.load %arg11[%c0_21, %c0_22] : memref<64x128xf32, #tpu.memory_space<vmem>>, vector<64x128xf32>
      %cst_23 = arith.constant 0.000000e+00 : f32
      %45 = vector.broadcast %cst_23 : f32 to vector<64x128xf32>
      %46 = arith.maximumf %44, %45 : vector<64x128xf32>
      %c0_24 = arith.constant 0 : index
      %c0_25 = arith.constant 0 : index
      %47 = vector.load %arg11[%c0_24, %c0_25] : memref<64x128xf32, #tpu.memory_space<vmem>>, vector<64x128xf32>
      tpu.vector_store %arg11[%c0_24, %c0_25], %46 {strides = array<i32>} : memref<64x128xf32, #tpu.memory_space<vmem>>, vector<64x128xf32>,
    } else {
    }
    return
  }
  func.func @transform_0(%arg0: i32) -> (i32, i32) {
    %c0_i32 = arith.constant 0 : i32
    %c0_i32_0 = arith.constant 0 : i32
    %c0_i32_1 = arith.constant 0 : i32
    return %c0_i32, %c0_i32_0 : i32, i32
  }
  func.func @transform_1(%arg0: i32) -> (i32, i32) {
    %c0_i32 = arith.constant 0 : i32
    %c0_i32_0 = arith.constant 0 : i32
    return %arg0, %c0_i32 : i32, i32
  }
  func.func @transform_2(%arg0: i32) -> (i32, i32) {
    %c0_i32 = arith.constant 0 : i32
    %c0_i32_0 = arith.constant 0 : i32
    return %arg0, %c0_i32 : i32, i32
  }
  func.func @transform_3(%arg0: i32) -> (i32, i32) {
    %c0_i32 = arith.constant 0 : i32
    %c0_i32_0 = arith.constant 0 : i32
    return %arg0, %c0_i32 : i32, i32
  }
  func.func @transform_4(%arg0: i32) -> (i32, i32) {
    %c0_i32 = arith.constant 0 : i32
    %c0_i32_0 = arith.constant 0 : i32
    return %c0_i32, %arg0 : i32, i32
  }
  func.func @transform_5(%arg0: i32) -> (i32, i32) {
    %c0_i32 = arith.constant 0 : i32
    %c0_i32_0 = arith.constant 0 : i32
    return %c0_i32, %arg0 : i32, i32
  }
  func.func @transform_6(%arg0: i32) -> (i32, i32) {
    %c0_i32 = arith.constant 0 : i32
    %c0_i32_0 = arith.constant 0 : i32
    %c0_i32_1 = arith.constant 0 : i32
    return %c0_i32, %c0_i32_0 : i32, i32
  }
  func.func @transform_7(%arg0: i32) -> (i32, i32) {
    %c0_i32 = arith.constant 0 : i32
    %c0_i32_0 = arith.constant 0 : i32
    %c0_i32_1 = arith.constant 0 : i32
    return %c0_i32, %c0_i32_0 : i32, i32
  }
  func.func @transform_8(%arg0: i32) -> (i32, i32) {
    %c0_i32 = arith.constant 0 : i32
    %c0_i32_0 = arith.constant 0 : i32
    %c0_i32_1 = arith.constant 0 : i32
    return %c0_i32, %c0_i32_0 : i32, i32
  }
  func.func @transform_9(%arg0: i32) -> (i32, i32) {
    %c0_i32 = arith.constant 0 : i32
    %c0_i32_0 = arith.constant 0 : i32
    %c0_i32_1 = arith.constant 0 : i32
    return %c0_i32, %c0_i32_0 : i32, i32
  }
  func.func @transform_10(%arg0: i32) -> (i32, i32) {
    %c0_i32 = arith.constant 0 : i32
    %c0_i32_0 = arith.constant 0 : i32
    %c0_i32_1 = arith.constant 0 : i32
    return %c0_i32, %c0_i32_0 : i32, i32
  }
}

</mosaic_0001>

<llo_original>
// kernel: tpu_custom_call.1
$region0: #{tpu_custom_call.1}
  #allocation0 [shape = 'u32[]', space=smem, size = 0x4, offset = 0x4, fixed_abs, tag = 'smem constant byte address 0x4 - core index']
  #allocation1 [shape = 'u32[144,128]{1,0:T(1,128)}', space=vmem, size = 0x12000, scoped, tag = 'internal scratch']
  %s0 = inlined_call_operand.vmem [shape: bf16[64,32], index: 0, kind: input, shape index: {}]
  %s1 = inlined_call_operand.vmem [shape: bf16[256,32], index: 1, kind: input, shape index: {}]
  %s2 = inlined_call_operand.vmem [shape: bf16[256,32], index: 2, kind: input, shape index: {}]
  %s3 = inlined_call_operand.vmem [shape: bf16[256,32], index: 3, kind: input, shape index: {}]
  %s4 = inlined_call_operand.vmem [shape: bf16[64,256], index: 4, kind: input, shape index: {}]
  %s5 = inlined_call_operand.vmem [shape: bf16[64,256], index: 5, kind: input, shape index: {}]
  %s6 = inlined_call_operand.vmem [shape: bf16[32,8], index: 6, kind: input, shape index: {}]
  %s7 = inlined_call_operand.vmem [shape: bf16[32,512], index: 7, kind: input, shape index: {}]
  %s8 = inlined_call_operand.vmem [shape: bf16[32,128], index: 8, kind: input, shape index: {}]
  %s9 = inlined_call_operand.vmem [shape: f32[1,128], index: 9, kind: input, shape index: {}]
  %s10 = inlined_call_operand.hbm [shape: f32[64,128], index: 10, kind: output, shape index: {}]
  %s11 = sld [smem:[#allocation0]]
  $region163: #{tpu_custom_call.1} parent=0
    _
  %s13 = ssub.s32 1, %s11
  %s14 = scalar_select 0, %s13, %s11
  $region1: #{tpu_custom_call.1} parent=0
    #allocation2 [shape = 'u8[32768]{0}', space=vmem, size = 0x8000, scoped, tag = 'input window, operand 4']
    #allocation3 [shape = 'u8[32768]{0}', space=vmem, size = 0x8000, scoped, tag = 'input window, operand 5']
    #allocation4 [shape = 'u8[32768]{0}', space=vmem, size = 0x8000, scoped, tag = 'output window, operand 0, single buffered']
    #allocation5 [shape = 's32[2]{0}', space=sflag, size = 0x8, scoped, tag = 'scoped memory for tpu_custom_call.1']
    %15 = vsyncpa [#allocation5], 0
    loop: start=0, step=1, limit=4
    $region2: #{tpu_custom_call.1} parent=1 // loop_pre_header
      _
    $region3: #{tpu_custom_call.1} parent=1 // loop_header
      %s17 = sphi 0, %s21
      %p18 = scmp.ge.s32.totalorder %s17, 4
      %s25 = sphi 0, %s25
      %s27 = sphi 0, %s25
      %s28 = sphi 0, %s27
      %s42 = sphi 0, %s28
      %s48 = sphi 0, %s50
      %s51 = sphi 0, %s48
      %s52 = sphi 0, %s51
      %s68 = sphi 0, %s52
      %s74 = sphi 0, %s76
      %s77 = sphi 0, %s74
      %s78 = sphi 0, %s77
      %s94 = sphi 0, %s78
      %s100 = sphi 0, %s102
      %s103 = sphi 0, %s100
      %s104 = sphi 0, %s103
      %s120 = sphi 0, %s104
      %s126 = sphi 0, %s128
      %s129 = sphi 0, %s126
      %s130 = sphi 0, %s129
      %s146 = sphi 0, %s130
      %s152 = sphi 0, %s154
      %s155 = sphi 0, %s152
      %s156 = sphi 0, %s155
      %s172 = sphi 0, %s156
      %s176 = sphi 0, %s176
      %s178 = sphi 0, %s176
      %s179 = sphi 0, %s178
      %s193 = sphi 0, %s179
      %s197 = sphi 0, %s197
      %s199 = sphi 0, %s197
      %s200 = sphi 0, %s199
      %s214 = sphi 0, %s200
      %s218 = sphi 0, %s218
      %s220 = sphi 0, %s218
      %s221 = sphi 0, %s220
      %s235 = sphi 0, %s221
      %s239 = sphi 0, %s239
      %s241 = sphi 0, %s239
      %s242 = sphi 0, %s241
      %s256 = sphi 0, %s242
      %s260 = sphi 0, %s260
      %s262 = sphi 0, %s260
      %s263 = sphi 0, %s262
      %s277 = sphi 0, %s263
    $region4: #{tpu_custom_call.1} parent=1 // loop_header_branch
      %20 = sbr.rel (%p18) target = $region8
    $region5: #{tpu_custom_call.1} parent=1 // loop_body
      %s22 = ssub.s32 %s17, 1
      %s23 = ssub.s32 %s17, 2
      %s24 = sadd.s32 %s17, 1
      %s26 = sadd.s32 %s25, 1
      %p29 = scmp.eq.s32.totalorder %s17, 1
      %p30 = scmp.ne.s32.totalorder %s25, %s27
      %p31 = scmp.eq.s32.totalorder %s17, 0
      %p32 = por %p30, %p31
      %p33 = scmp.ne.s32.totalorder %s25, %s27
      %p34 = scmp.eq.s32.totalorder %s22, 1
      %p35 = por %p33, %p34
      %p36 = scmp.ne.s32.totalorder %s27, %s28
      %p37 = scmp.eq.s32.totalorder %s22, 0
      %p38 = por %p36, %p37
      %p39 = scmp.ne.s32.totalorder %s27, %s28
      %p40 = scmp.eq.s32.totalorder %s23, 1
      %p41 = por %p39, %p40
      %p43 = scmp.ne.s32.totalorder %s28, %s42
      %p44 = scmp.eq.s32.totalorder %s23, 0
      %p45 = por %p43, %p44
      %s46 = ssub.s32 %s17, %s24
      %p47 = scmp.eq.s32.totalorder %s46, 0
      %s49 = sadd.s32 %s48, 1
      %s50 = scalar_select %p47, %s48, %s49
      %p53 = pneg %p47
      %p54 = scmp.eq.s32.totalorder %s17, 1
      %p55 = por %p53, %p54
      %p56 = scmp.ne.s32.totalorder %s48, %s51
      %p57 = scmp.eq.s32.totalorder %s17, 0
      %p58 = por %p56, %p57
      %p59 = scmp.ne.s32.totalorder %s48, %s51
      %p60 = scmp.eq.s32.totalorder %s22, 1
      %p61 = por %p59, %p60
      %p62 = scmp.ne.s32.totalorder %s51, %s52
      %p63 = scmp.eq.s32.totalorder %s22, 0
      %p64 = por %p62, %p63
      %p65 = scmp.ne.s32.totalorder %s51, %s52
      %p66 = scmp.eq.s32.totalorder %s23, 1
      %p67 = por %p65, %p66
      %p69 = scmp.ne.s32.totalorder %s52, %s68
      %p70 = scmp.eq.s32.totalorder %s23, 0
      %p71 = por %p69, %p70
      %s72 = ssub.s32 %s17, %s24
      %p73 = scmp.eq.s32.totalorder %s72, 0
      %s75 = sadd.s32 %s74, 1
      %s76 = scalar_select %p73, %s74, %s75
      %p79 = pneg %p73
      %p80 = scmp.eq.s32.totalorder %s17, 1
      %p81 = por %p79, %p80
      %p82 = scmp.ne.s32.totalorder %s74, %s77
      %p83 = scmp.eq.s32.totalorder %s17, 0
      %p84 = por %p82, %p83
      %p85 = scmp.ne.s32.totalorder %s74, %s77
      %p86 = scmp.eq.s32.totalorder %s22, 1
      %p87 = por %p85, %p86
      %p88 = scmp.ne.s32.totalorder %s77, %s78
      %p89 = scmp.eq.s32.totalorder %s22, 0
      %p90 = por %p88, %p89
      %p91 = scmp.ne.s32.totalorder %s77, %s78
      %p92 = scmp.eq.s32.totalorder %s23, 1
      %p93 = por %p91, %p92
      %p95 = scmp.ne.s32.totalorder %s78, %s94
      %p96 = scmp.eq.s32.totalorder %s23, 0
      %p97 = por %p95, %p96
      %s98 = ssub.s32 %s17, %s24
      %p99 = scmp.eq.s32.totalorder %s98, 0
      %s101 = sadd.s32 %s100, 1
      %s102 = scalar_select %p99, %s100, %s101
      %p105 = pneg %p99
      %p106 = scmp.eq.s32.totalorder %s17, 1
      %p107 = por %p105, %p106
      %p108 = scmp.ne.s32.totalorder %s100, %s103
      %p109 = scmp.eq.s32.totalorder %s17, 0
      %p110 = por %p108, %p109
      %p111 = scmp.ne.s32.totalorder %s100, %s103
      %p112 = scmp.eq.s32.totalorder %s22, 1
      %p113 = por %p111, %p112
      %p114 = scmp.ne.s32.totalorder %s103, %s104
      %p115 = scmp.eq.s32.totalorder %s22, 0
      %p116 = por %p114, %p115
      %p117 = scmp.ne.s32.totalorder %s103, %s104
      %p118 = scmp.eq.s32.totalorder %s23, 1
      %p119 = por %p117, %p118
      %p121 = scmp.ne.s32.totalorder %s104, %s120
      %p122 = scmp.eq.s32.totalorder %s23, 0
      %p123 = por %p121, %p122
      %s124 = ssub.s32 %s17, %s24
      %p125 = scmp.eq.s32.totalorder %s124, 0
      %s127 = sadd.s32 %s126, 1
      %s128 = scalar_select %p125, %s126, %s127
      %p131 = pneg %p125
      %p132 = scmp.eq.s32.totalorder %s17, 1
      %p133 = por %p131, %p132
      %p134 = scmp.ne.s32.totalorder %s126, %s129
      %p135 = scmp.eq.s32.totalorder %s17, 0
      %p136 = por %p134, %p135
      %p137 = scmp.ne.s32.totalorder %s126, %s129
      %p138 = scmp.eq.s32.totalorder %s22, 1
      %p139 = por %p137, %p138
      %p140 = scmp.ne.s32.totalorder %s129, %s130
      %p141 = scmp.eq.s32.totalorder %s22, 0
      %p142 = por %p140, %p141
      %p143 = scmp.ne.s32.totalorder %s129, %s130
      %p144 = scmp.eq.s32.totalorder %s23, 1
      %p145 = por %p143, %p144
      %p147 = scmp.ne.s32.totalorder %s130, %s146
      %p148 = scmp.eq.s32.totalorder %s23, 0
      %p149 = por %p147, %p148
      %s150 = ssub.s32 %s17, %s24
      %p151 = scmp.eq.s32.totalorder %s150, 0
      %s153 = sadd.s32 %s152, 1
      %s154 = scalar_select %p151, %s152, %s153
      %p157 = pneg %p151
      %p158 = scmp.eq.s32.totalorder %s17, 1
      %p159 = por %p157, %p158
      %p160 = scmp.ne.s32.totalorder %s152, %s155
      %p161 = scmp.eq.s32.totalorder %s17, 0
      %p162 = por %p160, %p161
      %p163 = scmp.ne.s32.totalorder %s152, %s155
      %p164 = scmp.eq.s32.totalorder %s22, 1
      %p165 = por %p163, %p164
      %p166 = scmp.ne.s32.totalorder %s155, %s156
      %p167 = scmp.eq.s32.totalorder %s22, 0
      %p168 = por %p166, %p167
      %p169 = scmp.ne.s32.totalorder %s155, %s156
      %p170 = scmp.eq.s32.totalorder %s23, 1
      %p171 = por %p169, %p170
      %p173 = scmp.ne.s32.totalorder %s156, %s172
      %p174 = scmp.eq.s32.totalorder %s23, 0
      %p175 = por %p173, %p174
      %s177 = sadd.s32 %s176, 1
      %p180 = scmp.eq.s32.totalorder %s17, 1
      %p181 = scmp.ne.s32.totalorder %s176, %s178
      %p182 = scmp.eq.s32.totalorder %s17, 0
      %p183 = por %p181, %p182
      %p184 = scmp.ne.s32.totalorder %s176, %s178
      %p185 = scmp.eq.s32.totalorder %s22, 1
      %p186 = por %p184, %p185
      %p187 = scmp.ne.s32.totalorder %s178, %s179
      %p188 = scmp.eq.s32.totalorder %s22, 0
      %p189 = por %p187, %p188
      %p190 = scmp.ne.s32.totalorder %s178, %s179
      %p191 = scmp.eq.s32.totalorder %s23, 1
      %p192 = por %p190, %p191
      %p194 = scmp.ne.s32.totalorder %s179, %s193
      %p195 = scmp.eq.s32.totalorder %s23, 0
      %p196 = por %p194, %p195
      %s198 = sadd.s32 %s197, 1
      %p201 = scmp.eq.s32.totalorder %s17, 1
      %p202 = scmp.ne.s32.totalorder %s197, %s199
      %p203 = scmp.eq.s32.totalorder %s17, 0
      %p204 = por %p202, %p203
      %p205 = scmp.ne.s32.totalorder %s197, %s199
      %p206 = scmp.eq.s32.totalorder %s22, 1
      %p207 = por %p205, %p206
      %p208 = scmp.ne.s32.totalorder %s199, %s200
      %p209 = scmp.eq.s32.totalorder %s22, 0
      %p210 = por %p208, %p209
      %p211 = scmp.ne.s32.totalorder %s199, %s200
      %p212 = scmp.eq.s32.totalorder %s23, 1
      %p213 = por %p211, %p212
      %p215 = scmp.ne.s32.totalorder %s200, %s214
      %p216 = scmp.eq.s32.totalorder %s23, 0
      %p217 = por %p215, %p216
      %s219 = sadd.s32 %s218, 1
      %p222 = scmp.eq.s32.totalorder %s17, 1
      %p223 = scmp.ne.s32.totalorder %s218, %s220
      %p224 = scmp.eq.s32.totalorder %s17, 0
      %p225 = por %p223, %p224
      %p226 = scmp.ne.s32.totalorder %s218, %s220
      %p227 = scmp.eq.s32.totalorder %s22, 1
      %p228 = por %p226, %p227
      %p229 = scmp.ne.s32.totalorder %s220, %s221
      %p230 = scmp.eq.s32.totalorder %s22, 0
      %p231 = por %p229, %p230
      %p232 = scmp.ne.s32.totalorder %s220, %s221
      %p233 = scmp.eq.s32.totalorder %s23, 1
      %p234 = por %p232, %p233
      %p236 = scmp.ne.s32.totalorder %s221, %s235
      %p237 = scmp.eq.s32.totalorder %s23, 0
      %p238 = por %p236, %p237
      %s240 = sadd.s32 %s239, 1
      %p243 = scmp.eq.s32.totalorder %s17, 1
      %p244 = scmp.ne.s32.totalorder %s239, %s241
      %p245 = scmp.eq.s32.totalorder %s17, 0
      %p246 = por %p244, %p245
      %p247 = scmp.ne.s32.totalorder %s239, %s241
      %p248 = scmp.eq.s32.totalorder %s22, 1
      %p249 = por %p247, %p248
      %p250 = scmp.ne.s32.totalorder %s241, %s242
      %p251 = scmp.eq.s32.totalorder %s22, 0
      %p252 = por %p250, %p251
      %p253 = scmp.ne.s32.totalorder %s241, %s242
      %p254 = scmp.eq.s32.totalorder %s23, 1
      %p255 = por %p253, %p254
      %p257 = scmp.ne.s32.totalorder %s242, %s256
      %p258 = scmp.eq.s32.totalorder %s23, 0
      %p259 = por %p257, %p258
      %s261 = sadd.s32 %s260, 1
      %p264 = scmp.eq.s32.totalorder %s17, 1
      %p265 = scmp.ne.s32.totalorder %s260, %s262
      %p266 = scmp.eq.s32.totalorder %s17, 0
      %p267 = por %p265, %p266
      %p268 = scmp.ne.s32.totalorder %s260, %s262
      %p269 = scmp.eq.s32.totalorder %s22, 1
      %p270 = por %p268, %p269
      %p271 = scmp.ne.s32.totalorder %s262, %s263
      %p272 = scmp.eq.s32.totalorder %s22, 0
      %p273 = por %p271, %p272
      %p274 = scmp.ne.s32.totalorder %s262, %s263
      %p275 = scmp.eq.s32.totalorder %s23, 1
      %p276 = por %p274, %p275
      %p278 = scmp.ne.s32.totalorder %s263, %s277
      %p279 = scmp.eq.s32.totalorder %s23, 0
      %p280 = por %p278, %p279
      %p281 = scmp.le.s32.totalorder 1, %s17
      %p282 = scmp.lt.s32.totalorder %s17, 3
      %p283 = pnand %p281, %p282
      %p284 = pneg %p283
      // Predicated region
      $region9: #{tpu_custom_call.1} parent=5 // pred_check
        _
      $region10: #{tpu_custom_call.1} parent=5 // pred_check_branch
        %286 = sbr.rel (%p283) target = $region12
      $region11: #{tpu_custom_call.1} parent=5 // pred_region
        %s287 = ssub.s32 %s17, 1
        // Predicated region
        $region13: #{tpu_custom_call.1} parent=11 // pred_check
          %p288 = pneg %p38
        $region14: #{tpu_custom_call.1} parent=11 // pred_check_branch
          %290 = sbr.rel (%p288) target = $region16
        $region15: #{tpu_custom_call.1} parent=11 // pred_region
          _
        $region16: #{tpu_custom_call.1} parent=11 // pred_fallthru
          _
        // Predicated region
        $region17: #{tpu_custom_call.1} parent=11 // pred_check
          %p291 = pneg %p189
        $region18: #{tpu_custom_call.1} parent=11 // pred_check_branch
          %293 = sbr.rel (%p291) target = $region20
        $region19: #{tpu_custom_call.1} parent=11 // pred_region
          _
        $region20: #{tpu_custom_call.1} parent=11 // pred_fallthru
          _
        // Predicated region
        $region21: #{tpu_custom_call.1} parent=11 // pred_check
          %p294 = pneg %p210
        $region22: #{tpu_custom_call.1} parent=11 // pred_check_branch
          %296 = sbr.rel (%p294) target = $region24
        $region23: #{tpu_custom_call.1} parent=11 // pred_region
          _
        $region24: #{tpu_custom_call.1} parent=11 // pred_fallthru
          _
        // Predicated region
        $region25: #{tpu_custom_call.1} parent=11 // pred_check
          %p297 = pneg %p231
        $region26: #{tpu_custom_call.1} parent=11 // pred_check_branch
          %299 = sbr.rel (%p297) target = $region28
        $region27: #{tpu_custom_call.1} parent=11 // pred_region
          _
        $region28: #{tpu_custom_call.1} parent=11 // pred_fallthru
          _
        // Predicated region
        $region29: #{tpu_custom_call.1} parent=11 // pred_check
          %p300 = pneg %p252
        $region30: #{tpu_custom_call.1} parent=11 // pred_check_branch
          %302 = sbr.rel (%p300) target = $region32
        $region31: #{tpu_custom_call.1} parent=11 // pred_region
          _
        $region32: #{tpu_custom_call.1} parent=11 // pred_fallthru
          _
      $region12: #{tpu_custom_call.1} parent=5 // pred_fallthru
        _
      %p303 = scmp.lt.s32.totalorder %s17, 2
      // Predicated region
      $region33: #{tpu_custom_call.1} parent=5 // pred_check
        %p304 = pneg %p303
      $region34: #{tpu_custom_call.1} parent=5 // pred_check_branch
        %306 = sbr.rel (%p304) target = $region36
      $region35: #{tpu_custom_call.1} parent=5 // pred_region
        // Predicated region
        $region37: #{tpu_custom_call.1} parent=35 // pred_check
          %p307 = pneg %p58
        $region38: #{tpu_custom_call.1} parent=35 // pred_check_branch
          %309 = sbr.rel (%p307) target = $region40
        $region39: #{tpu_custom_call.1} parent=35 // pred_region
          %s310 = smul.u32 16, %s17
          %p311 = scmp.lt.s32.totalorder %s310, 31
          %s312 = scalar_select %p311, %s310, 31
          %s313 = smul.addr %s312, 4
          %s314 = scalar_lea.vmem %s1, %s313
          %s315 = smul.u32 16, %s17
        $region40: #{tpu_custom_call.1} parent=35 // pred_fallthru
          _
        // Predicated region
        $region41: #{tpu_custom_call.1} parent=35 // pred_check
          %p316 = pneg %p84
        $region42: #{tpu_custom_call.1} parent=35 // pred_check_branch
          %318 = sbr.rel (%p316) target = $region44
        $region43: #{tpu_custom_call.1} parent=35 // pred_region
          %s319 = smul.u32 16, %s17
          %p320 = scmp.lt.s32.totalorder %s319, 31
          %s321 = scalar_select %p320, %s319, 31
          %s322 = smul.addr %s321, 4
          %s323 = scalar_lea.vmem %s2, %s322
          %s324 = smul.u32 16, %s17
        $region44: #{tpu_custom_call.1} parent=35 // pred_fallthru
          _
        // Predicated region
        $region45: #{tpu_custom_call.1} parent=35 // pred_check
          %p325 = pneg %p110
        $region46: #{tpu_custom_call.1} parent=35 // pred_check_branch
          %327 = sbr.rel (%p325) target = $region48
        $region47: #{tpu_custom_call.1} parent=35 // pred_region
          %s328 = smul.u32 16, %s17
          %p329 = scmp.lt.s32.totalorder %s328, 31
          %s330 = scalar_select %p329, %s328, 31
          %s331 = smul.addr %s330, 4
          %s332 = scalar_lea.vmem %s3, %s331
          %s333 = smul.u32 16, %s17
        $region48: #{tpu_custom_call.1} parent=35 // pred_fallthru
          _
        // Predicated region
        $region49: #{tpu_custom_call.1} parent=35 // pred_check
          %p334 = pneg %p136
        $region50: #{tpu_custom_call.1} parent=35 // pred_check_branch
          %336 = sbr.rel (%p334) target = $region52
        $region51: #{tpu_custom_call.1} parent=35 // pred_region
          %s337 = sand.u32 %s126, 1
          %s338 = sand.u32 %s126, 1
          %s339 = smul.addr %s338, 32
          %s340 = scalar_lea.vmem [#allocation2], %s339
          %s341 = smul.addr %s17, 4
          %s342 = scalar_lea.vmem %s4, %s341
          // Predicated region
          $region53: #{tpu_custom_call.1} parent=51 // pred_check
            _
          $region54: #{tpu_custom_call.1} parent=51 // pred_check_branch
            %344 = sbr.rel (0) target = $region56
          $region55: #{tpu_custom_call.1} parent=51 // pred_region
            // Predicated region
            $region57: #{tpu_custom_call.1} parent=55 // pred_check
              _
            $region58: #{tpu_custom_call.1} parent=55 // pred_check_branch
              %346 = sbr.rel target = $region60
            $region59: #{tpu_custom_call.1} parent=55 // pred_region
              // Predicated region
              $region72: #{tpu_custom_call.1} parent=59 // pred_check
                _
              $region73: #{tpu_custom_call.1} parent=59 // pred_check_branch
                %375 = sbr.rel (0) target = $region75
              $region74: #{tpu_custom_call.1} parent=59 // pred_region
                loop: start=0, step=1, limit=1
                $region76: #{tpu_custom_call.1} parent=74 // loop_pre_header
                  _
                $region77: #{tpu_custom_call.1} parent=74 // loop_header
                  %s377 = sphi 0, %s381
                  %p378 = scmp.ge.s32.totalorder %s377, 1
                  %s382 = sphi %s342, %s342
                  %s383 = sphi %s340, %s340
                $region78: #{tpu_custom_call.1} parent=74 // loop_header_branch
                  %380 = sbr.rel (%p378) target = $region82
                $region79: #{tpu_custom_call.1} parent=74 // loop_body
                  _
                $region80: #{tpu_custom_call.1} parent=74 // loop_footer
                  %s381 = sadd.s32 1, %s377
                $region81: #{tpu_custom_call.1} parent=74 // loop_footer_branch
                  %376 = sbr.rel target = $region77
                $region82: #{tpu_custom_call.1} parent=74 // loop_exit
                  _
                loop: start=0, step=1, limit=1
                $region83: #{tpu_custom_call.1} parent=74 // loop_pre_header
                  _
                $region84: #{tpu_custom_call.1} parent=74 // loop_header
                  %s386 = sphi 0, %s390
                  %p387 = scmp.ge.s32.totalorder %s386, 1
                  %s391 = sphi %s342, %s342
                  %s392 = sphi %s340, %s340
                $region85: #{tpu_custom_call.1} parent=74 // loop_header_branch
                  %389 = sbr.rel (%p387) target = $region89
                $region86: #{tpu_custom_call.1} parent=74 // loop_body
                  %v393 = vld [vmem:[%s391] sm:$0xf]
                  %394 = vst [vmem:[%s392] sm:$0xf] %v393
                  %v395 = vld [vmem:[%s391 + $0x8] sm:$0xf]
                  %396 = vst [vmem:[%s392 + $0x4] sm:$0xf] %v395
                  %v397 = vld [vmem:[%s391 + $0x10] sm:$0xf]
                  %398 = vst [vmem:[%s392 + $0x8] sm:$0xf] %v397
                  %v399 = vld [vmem:[%s391 + $0x18] sm:$0xf]
                  %400 = vst [vmem:[%s392 + $0xc] sm:$0xf] %v399
                  %v401 = vld [vmem:[%s391 + $0x20] sm:$0xf]
                  %402 = vst [vmem:[%s392 + $0x10] sm:$0xf] %v401
                  %v403 = vld [vmem:[%s391 + $0x28] sm:$0xf]
                  %404 = vst [vmem:[%s392 + $0x14] sm:$0xf] %v403
                  %v405 = vld [vmem:[%s391 + $0x30] sm:$0xf]
                  %406 = vst [vmem:[%s392 + $0x18] sm:$0xf] %v405
                  %v407 = vld [vmem:[%s391 + $0x38] sm:$0xf]
                  %408 = vst [vmem:[%s392 + $0x1c] sm:$0xf] %v407
                $region87: #{tpu_custom_call.1} parent=74 // loop_footer
                  %s390 = sadd.s32 1, %s386
                $region88: #{tpu_custom_call.1} parent=74 // loop_footer_branch
                  %385 = sbr.rel target = $region84
                $region89: #{tpu_custom_call.1} parent=74 // loop_exit
                  _
              $region75: #{tpu_custom_call.1} parent=59 // pred_fallthru
                _
            $region60: #{tpu_custom_call.1} parent=55 // pred_fallthru
              _
            // Predicated region
            $region61: #{tpu_custom_call.1} parent=55 // pred_check
              _
            $region62: #{tpu_custom_call.1} parent=55 // pred_check_branch
              %348 = sbr.rel (0) target = $region64
            $region63: #{tpu_custom_call.1} parent=55 // pred_region
              loop: start=0, step=1, limit=1
              $region65: #{tpu_custom_call.1} parent=63 // loop_pre_header
                _
              $region66: #{tpu_custom_call.1} parent=63 // loop_header
                %s351 = sphi 0, %s355
                %p352 = scmp.ge.s32.totalorder %s351, 1
                %s356 = sphi %s342, %s342
                %s357 = sphi %s340, %s340
              $region67: #{tpu_custom_call.1} parent=63 // loop_header_branch
                %354 = sbr.rel (%p352) target = $region71
              $region68: #{tpu_custom_call.1} parent=63 // loop_body
                %v358 = vld [vmem:[%s356] sm:$0xf]
                %359 = vst [vmem:[%s357] sm:$0xf] %v358
                %v360 = vld [vmem:[%s356 + $0x8] sm:$0xf]
                %361 = vst [vmem:[%s357 + $0x4] sm:$0xf] %v360
                %v362 = vld [vmem:[%s356 + $0x10] sm:$0xf]
                %363 = vst [vmem:[%s357 + $0x8] sm:$0xf] %v362
                %v364 = vld [vmem:[%s356 + $0x18] sm:$0xf]
                %365 = vst [vmem:[%s357 + $0xc] sm:$0xf] %v364
                %v366 = vld [vmem:[%s356 + $0x20] sm:$0xf]
                %367 = vst [vmem:[%s357 + $0x10] sm:$0xf] %v366
                %v368 = vld [vmem:[%s356 + $0x28] sm:$0xf]
                %369 = vst [vmem:[%s357 + $0x14] sm:$0xf] %v368
                %v370 = vld [vmem:[%s356 + $0x30] sm:$0xf]
                %371 = vst [vmem:[%s357 + $0x18] sm:$0xf] %v370
                %v372 = vld [vmem:[%s356 + $0x38] sm:$0xf]
                %373 = vst [vmem:[%s357 + $0x1c] sm:$0xf] %v372
              $region69: #{tpu_custom_call.1} parent=63 // loop_footer
                %s355 = sadd.s32 1, %s351
              $region70: #{tpu_custom_call.1} parent=63 // loop_footer_branch
                %350 = sbr.rel target = $region66
              $region71: #{tpu_custom_call.1} parent=63 // loop_exit
                _
            $region64: #{tpu_custom_call.1} parent=55 // pred_fallthru
              _
          $region56: #{tpu_custom_call.1} parent=51 // pred_fallthru
            _
          %409 = vnop
        $region52: #{tpu_custom_call.1} parent=35 // pred_fallthru
          _
        // Predicated region
        $region90: #{tpu_custom_call.1} parent=35 // pred_check
          %p410 = pneg %p162
        $region91: #{tpu_custom_call.1} parent=35 // pred_check_branch
          %412 = sbr.rel (%p410) target = $region93
        $region92: #{tpu_custom_call.1} parent=35 // pred_region
          %s413 = sand.u32 %s152, 1
          %s414 = sand.u32 %s152, 1
          %s415 = smul.addr %s414, 32
          %s416 = scalar_lea.vmem [#allocation3], %s415
          %s417 = smul.addr %s17, 4
          %s418 = scalar_lea.vmem %s5, %s417
          // Predicated region
          $region94: #{tpu_custom_call.1} parent=92 // pred_check
            _
          $region95: #{tpu_custom_call.1} parent=92 // pred_check_branch
            %420 = sbr.rel (0) target = $region97
          $region96: #{tpu_custom_call.1} parent=92 // pred_region
            // Predicated region
            $region98: #{tpu_custom_call.1} parent=96 // pred_check
              _
            $region99: #{tpu_custom_call.1} parent=96 // pred_check_branch
              %422 = sbr.rel target = $region101
            $region100: #{tpu_custom_call.1} parent=96 // pred_region
              // Predicated region
              $region113: #{tpu_custom_call.1} parent=100 // pred_check
                _
              $region114: #{tpu_custom_call.1} parent=100 // pred_check_branch
                %451 = sbr.rel (0) target = $region116
              $region115: #{tpu_custom_call.1} parent=100 // pred_region
                loop: start=0, step=1, limit=1
                $region117: #{tpu_custom_call.1} parent=115 // loop_pre_header
                  _
                $region118: #{tpu_custom_call.1} parent=115 // loop_header
                  %s453 = sphi 0, %s457
                  %p454 = scmp.ge.s32.totalorder %s453, 1
                  %s458 = sphi %s418, %s418
                  %s459 = sphi %s416, %s416
                $region119: #{tpu_custom_call.1} parent=115 // loop_header_branch
                  %456 = sbr.rel (%p454) target = $region123
                $region120: #{tpu_custom_call.1} parent=115 // loop_body
                  _
                $region121: #{tpu_custom_call.1} parent=115 // loop_footer
                  %s457 = sadd.s32 1, %s453
                $region122: #{tpu_custom_call.1} parent=115 // loop_footer_branch
                  %452 = sbr.rel target = $region118
                $region123: #{tpu_custom_call.1} parent=115 // loop_exit
                  _
                loop: start=0, step=1, limit=1
                $region124: #{tpu_custom_call.1} parent=115 // loop_pre_header
                  _
                $region125: #{tpu_custom_call.1} parent=115 // loop_header
                  %s462 = sphi 0, %s466
                  %p463 = scmp.ge.s32.totalorder %s462, 1
                  %s467 = sphi %s418, %s418
                  %s468 = sphi %s416, %s416
                $region126: #{tpu_custom_call.1} parent=115 // loop_header_branch
                  %465 = sbr.rel (%p463) target = $region130
                $region127: #{tpu_custom_call.1} parent=115 // loop_body
                  %v469 = vld [vmem:[%s467] sm:$0xf]
                  %470 = vst [vmem:[%s468] sm:$0xf] %v469
                  %v471 = vld [vmem:[%s467 + $0x8] sm:$0xf]
                  %472 = vst [vmem:[%s468 + $0x4] sm:$0xf] %v471
                  %v473 = vld [vmem:[%s467 + $0x10] sm:$0xf]
                  %474 = vst [vmem:[%s468 + $0x8] sm:$0xf] %v473
                  %v475 = vld [vmem:[%s467 + $0x18] sm:$0xf]
                  %476 = vst [vmem:[%s468 + $0xc] sm:$0xf] %v475
                  %v477 = vld [vmem:[%s467 + $0x20] sm:$0xf]
                  %478 = vst [vmem:[%s468 + $0x10] sm:$0xf] %v477
                  %v479 = vld [vmem:[%s467 + $0x28] sm:$0xf]
                  %480 = vst [vmem:[%s468 + $0x14] sm:$0xf] %v479
                  %v481 = vld [vmem:[%s467 + $0x30] sm:$0xf]
                  %482 = vst [vmem:[%s468 + $0x18] sm:$0xf] %v481
                  %v483 = vld [vmem:[%s467 + $0x38] sm:$0xf]
                  %484 = vst [vmem:[%s468 + $0x1c] sm:$0xf] %v483
                $region128: #{tpu_custom_call.1} parent=115 // loop_footer
                  %s466 = sadd.s32 1, %s462
                $region129: #{tpu_custom_call.1} parent=115 // loop_footer_branch
                  %461 = sbr.rel target = $region125
                $region130: #{tpu_custom_call.1} parent=115 // loop_exit
                  _
              $region116: #{tpu_custom_call.1} parent=100 // pred_fallthru
                _
            $region101: #{tpu_custom_call.1} parent=96 // pred_fallthru
              _
            // Predicated region
            $region102: #{tpu_custom_call.1} parent=96 // pred_check
              _
            $region103: #{tpu_custom_call.1} parent=96 // pred_check_branch
              %424 = sbr.rel (0) target = $region105
            $region104: #{tpu_custom_call.1} parent=96 // pred_region
              loop: start=0, step=1, limit=1
              $region106: #{tpu_custom_call.1} parent=104 // loop_pre_header
                _
              $region107: #{tpu_custom_call.1} parent=104 // loop_header
                %s427 = sphi 0, %s431
                %p428 = scmp.ge.s32.totalorder %s427, 1
                %s432 = sphi %s418, %s418
                %s433 = sphi %s416, %s416
              $region108: #{tpu_custom_call.1} parent=104 // loop_header_branch
                %430 = sbr.rel (%p428) target = $region112
              $region109: #{tpu_custom_call.1} parent=104 // loop_body
                %v434 = vld [vmem:[%s432] sm:$0xf]
                %435 = vst [vmem:[%s433] sm:$0xf] %v434
                %v436 = vld [vmem:[%s432 + $0x8] sm:$0xf]
                %437 = vst [vmem:[%s433 + $0x4] sm:$0xf] %v436
                %v438 = vld [vmem:[%s432 + $0x10] sm:$0xf]
                %439 = vst [vmem:[%s433 + $0x8] sm:$0xf] %v438
                %v440 = vld [vmem:[%s432 + $0x18] sm:$0xf]
                %441 = vst [vmem:[%s433 + $0xc] sm:$0xf] %v440
                %v442 = vld [vmem:[%s432 + $0x20] sm:$0xf]
                %443 = vst [vmem:[%s433 + $0x10] sm:$0xf] %v442
                %v444 = vld [vmem:[%s432 + $0x28] sm:$0xf]
                %445 = vst [vmem:[%s433 + $0x14] sm:$0xf] %v444
                %v446 = vld [vmem:[%s432 + $0x30] sm:$0xf]
                %447 = vst [vmem:[%s433 + $0x18] sm:$0xf] %v446
                %v448 = vld [vmem:[%s432 + $0x38] sm:$0xf]
                %449 = vst [vmem:[%s433 + $0x1c] sm:$0xf] %v448
              $region110: #{tpu_custom_call.1} parent=104 // loop_footer
                %s431 = sadd.s32 1, %s427
              $region111: #{tpu_custom_call.1} parent=104 // loop_footer_branch
                %426 = sbr.rel target = $region107
              $region112: #{tpu_custom_call.1} parent=104 // loop_exit
                _
            $region105: #{tpu_custom_call.1} parent=96 // pred_fallthru
              _
          $region97: #{tpu_custom_call.1} parent=92 // pred_fallthru
            _
          %485 = vnop
        $region93: #{tpu_custom_call.1} parent=35 // pred_fallthru
          _
      $region36: #{tpu_custom_call.1} parent=5 // pred_fallthru
        _
      %p486 = scmp.le.s32.totalorder 1, %s17
      %p487 = scmp.lt.s32.totalorder %s17, 3
      %p488 = pnand %p486, %p487
      %p489 = pneg %p488
      // Predicated region
      $region131: #{tpu_custom_call.1} parent=5 // pred_check
        _
      $region132: #{tpu_custom_call.1} parent=5 // pred_check_branch
        %491 = sbr.rel (%p488) target = $region134
      $region133: #{tpu_custom_call.1} parent=5 // pred_region
        %s492 = ssub.s32 %s17, 1
        %s493 = sand.u32 %s129, 1
        %s494 = sand.u32 %s129, 1
        %s495 = smul.addr %s494, 32
        %s496 = scalar_lea.vmem [#allocation2], %s495
        // Predicated region
        $region135: #{tpu_custom_call.1} parent=133 // pred_check
          %p497 = pneg %p142
        $region136: #{tpu_custom_call.1} parent=133 // pred_check_branch
          %499 = sbr.rel (%p497) target = $region138
        $region137: #{tpu_custom_call.1} parent=133 // pred_region
          _
        $region138: #{tpu_custom_call.1} parent=133 // pred_fallthru
          _
        %s500 = sand.u32 %s155, 1
        %s501 = sand.u32 %s155, 1
        %s502 = smul.addr %s501, 32
        %s503 = scalar_lea.vmem [#allocation3], %s502
        // Predicated region
        $region139: #{tpu_custom_call.1} parent=133 // pred_check
          %p504 = pneg %p168
        $region140: #{tpu_custom_call.1} parent=133 // pred_check_branch
          %506 = sbr.rel (%p504) target = $region142
        $region141: #{tpu_custom_call.1} parent=133 // pred_region
          _
        $region142: #{tpu_custom_call.1} parent=133 // pred_fallthru
          _
        %p507 = pneg %p38
        %p508 = pneg %p35
        %s509 = smul.u32 16, %s22
        %p510 = scmp.lt.s32.totalorder %s509, 31
        %s511 = scalar_select %p510, %s509, 31
        %s512 = smul.addr %s511, 4
        %s513 = scalar_lea.vmem %s1, %s512
        %p514 = pneg %p64
        %p515 = pneg %p61
        %s516 = smul.u32 16, %s22
        %p517 = scmp.lt.s32.totalorder %s516, 31
        %s518 = scalar_select %p517, %s516, 31
        %s519 = smul.addr %s518, 4
        %s520 = scalar_lea.vmem %s2, %s519
        %p521 = pneg %p90
        %p522 = pneg %p87
        %s523 = smul.u32 16, %s22
        %p524 = scmp.lt.s32.totalorder %s523, 31
        %s525 = scalar_select %p524, %s523, 31
        %s526 = smul.addr %s525, 4
        %s527 = scalar_lea.vmem %s3, %s526
        %p528 = pneg %p116
        %p529 = pneg %p113
        %s530 = sand.u32 %s129, 1
        %s531 = sand.u32 %s129, 1
        %s532 = smul.addr %s531, 32
        %s533 = scalar_lea.vmem [#allocation2], %s532
        %p534 = pneg %p142
        %p535 = pneg %p139
        %s536 = sand.u32 %s155, 1
        %s537 = sand.u32 %s155, 1
        %s538 = smul.addr %s537, 32
        %s539 = scalar_lea.vmem [#allocation3], %s538
        %p540 = pneg %p168
        %p541 = pneg %p165
        %p542 = pneg %p189
        %p543 = pneg %p186
        %p544 = pneg %p210
        %p545 = pneg %p207
        %p546 = pneg %p231
        %p547 = pneg %p228
        %p548 = pneg %p252
        %p549 = pneg %p249
        %p550 = pneg %p273
        %p551 = pneg %p270
        %s552 = smul.u32 16, %s22
        %p553 = scmp.lt.s32.totalorder %s552, 31
        %s554 = scalar_select %p553, %s552, 31
        %s555 = smul.addr %s554, 4
        %s556 = scalar_lea.vmem %s1, %s555
        %s557 = smul.u32 16, %s22
        %s558 = smul.u32 16, %s22
        %p559 = scmp.lt.s32.totalorder %s558, 31
        %s560 = scalar_select %p559, %s558, 31
        %s561 = smul.addr %s560, 4
        %s562 = scalar_lea.vmem %s2, %s561
        %s563 = smul.u32 16, %s22
        %s564 = smul.u32 16, %s22
        %p565 = scmp.lt.s32.totalorder %s564, 31
        %s566 = scalar_select %p565, %s564, 31
        %s567 = smul.addr %s566, 4
        %s568 = scalar_lea.vmem %s3, %s567
        %s569 = smul.u32 16, %s22
        %p571 = scmp.eq.s32.totalorder %s22, 0
        // Predicated region
        $region143: #{tpu_custom_call.1} parent=133 // pred_check
          %p572 = pneg %p571
        $region144: #{tpu_custom_call.1} parent=133 // pred_check_branch
          %574 = sbr.rel (%p572) target = $region146
        $region145: #{tpu_custom_call.1} parent=133 // pred_region
          %v575 = vld [vmem:[%s0] sm:$0xf]
          %v576 = vld [vmem:[%s0 + $0x4] sm:$0xf]
          %v577 = vld [vmem:[%s0 + $0x8] sm:$0xf]
          %v578 = vld [vmem:[%s0 + $0xc] sm:$0xf]
          %v579 = vld [vmem:[%s0 + $0x10] sm:$0xf]
          %v580 = vld [vmem:[%s0 + $0x14] sm:$0xf]
          %v581 = vld [vmem:[%s0 + $0x18] sm:$0xf]
          %v582 = vld [vmem:[%s0 + $0x1c] sm:$0xf]
          %v583 = vld [vmem:[%s8] sm:$0xf]
          %v584 = vld [vmem:[%s8 + $0x4] sm:$0xf]
          %v585 = vld [vmem:[%s8 + $0x8] sm:$0xf]
          %v586 = vld [vmem:[%s8 + $0xc] sm:$0xf]
          %v587 = vld [vmem:[%s9] sm:$0x1]
          %v589 = vlaneseq
          %v590 = vshrl.u32 %v589, 7
          %v591 = vsub.s32 0, %v590
          %v592 = vrot.slane %v587, %v591
          %v602 = vunpack.c.l.b16 %v575
          %v603 = vunpack.c.l.b16 %v576
          %v604 = vunpack.c.l.b16 %v577
          %v605 = vunpack.c.l.b16 %v578
          %v606 = vunpack.c.l.b16 %v579
          %v607 = vunpack.c.l.b16 %v580
          %v608 = vunpack.c.l.b16 %v581
          %v609 = vunpack.c.l.b16 %v582
          %v610 = vpack.c.b16 %v603, %v602
          %v611 = vpack.c.b16 %v605, %v604
          %v612 = vpack.c.b16 %v607, %v606
          %v613 = vpack.c.b16 %v609, %v608
          %v618 = vunpack.c.l.b16 %v583
          %v619 = vunpack.c.l.b16 %v584
          %v620 = vunpack.c.l.b16 %v585
          %v621 = vunpack.c.l.b16 %v586
          %v622 = vpack.c.b16 %v619, %v618
          %v623 = vpack.c.b16 %v621, %v620
          %vm626 = vcmask 261120
          %v628 = vsel %vm626, %v610, 0
          %v631 = vsel %vm626, %v611, 0
          %v634 = vsel %vm626, %v612, 0
          %v637 = vsel %vm626, %v613, 0
          %639 = vmatprep.subr.bf16.mxu0 0
          %640 = vmatpush1.bf16.msra.mxu0 %v622
          %641 = vmatprep.subr.bf16.mxu0 0
          %642 = vmatpush1.bf16.msra.mxu0 %v623
          %643 = vmatprep.subr.bf16.mxu0 0
          %644 = vmatpush1.bf16.msra.mxu0 0
          %645 = vmatprep.subr.bf16.mxu0 0
          %646 = vmatpush1.bf16.msra.mxu0 0
          %647 = vmatprep.subr.bf16.mxu0 0
          %648 = vmatpush1.bf16.msra.mxu0 0
          %649 = vmatprep.subr.bf16.mxu0 0
          %650 = vmatpush1.bf16.msra.mxu0 0
          %651 = vmatprep.subr.bf16.mxu0 0
          %652 = vmatpush1.bf16.msra.mxu0 0
          %653 = vmatprep.subr.bf16.mxu0 0
          %654 = vmatpush1.bf16.msra.mxu0 0
          %655 = vmatprep.subr.bf16.mxu0 0
          %656 = vmatpush1.bf16.msra.mxu0 0
          %657 = vmatprep.subr.bf16.mxu0 0
          %658 = vmatpush1.bf16.msra.mxu0 0
          %659 = vmatprep.subr.bf16.mxu0 0
          %660 = vmatpush1.bf16.msra.mxu0 0
          %661 = vmatprep.subr.bf16.mxu0 0
          %662 = vmatpush1.bf16.msra.mxu0 0
          %663 = vmatprep.subr.bf16.mxu0 0
          %664 = vmatpush1.bf16.msra.mxu0 0
          %665 = vmatprep.subr.bf16.mxu0 0
          %666 = vmatpush1.bf16.msra.mxu0 0
          %667 = vmatprep.subr.bf16.mxu0 0
          %668 = vmatpush1.bf16.msra.mxu0 0
          %669 = vmatprep.subr.bf16.mxu0 0
          %670 = vmatpush1.bf16.msra.mxu0 0
          %671 = vmatprep.mubr.bf16.mxu0 0
          %672 = vmatmul.mubr.bf16.gmra.mrb[0].mxu0 %v628
          %v673 = vpop.f32.mrb[0].mxu0
          %v674 = vadd.f32 %v592, %v673
          %v675 = vpop.f32.mrb[0].mxu0
          %v676 = vpop.f32.mrb[0].mxu0
          %v677 = vadd.f32 %v592, %v676
          %v678 = vpop.f32.mrb[0].mxu0
          %679 = vmatprep.mubr.bf16.mxu0 0
          %680 = vmatmul.mubr.bf16.gmra.mrb[0].mxu0 %v631
          %v681 = vpop.f32.mrb[0].mxu0
          %v682 = vadd.f32 %v592, %v681
          %v683 = vpop.f32.mrb[0].mxu0
          %v684 = vpop.f32.mrb[0].mxu0
          %v685 = vadd.f32 %v592, %v684
          %v686 = vpop.f32.mrb[0].mxu0
          %687 = vmatprep.mubr.bf16.mxu0 0
          %688 = vmatmul.mubr.bf16.gmra.mrb[0].mxu0 %v634
          %v689 = vpop.f32.mrb[0].mxu0
          %v690 = vadd.f32 %v592, %v689
          %v691 = vpop.f32.mrb[0].mxu0
          %v692 = vpop.f32.mrb[0].mxu0
          %v693 = vadd.f32 %v592, %v692
          %v694 = vpop.f32.mrb[0].mxu0
          %695 = vmatprep.mubr.bf16.mxu0 0
          %696 = vmatmul.mubr.bf16.gmra.mrb[0].mxu0 %v637
          %v697 = vpop.f32.mrb[0].mxu0
          %v698 = vadd.f32 %v592, %v697
          %v699 = vpop.f32.mrb[0].mxu0
          %v700 = vpop.f32.mrb[0].mxu0
          %v701 = vadd.f32 %v592, %v700
          %v702 = vpop.f32.mrb[0].mxu0
          %703 = vdwg.mxu0
          %704 = vst [vmem:[#allocation4] sm:$0xff] %v674
          %705 = vst [vmem:[#allocation4 + $0x8] sm:$0xff] %v677
          %706 = vst [vmem:[#allocation4 + $0x10] sm:$0xff] %v682
          %707 = vst [vmem:[#allocation4 + $0x18] sm:$0xff] %v685
          %708 = vst [vmem:[#allocation4 + $0x20] sm:$0xff] %v690
          %709 = vst [vmem:[#allocation4 + $0x28] sm:$0xff] %v693
          %710 = vst [vmem:[#allocation4 + $0x30] sm:$0xff] %v698
          %711 = vst [vmem:[#allocation4 + $0x38] sm:$0xff] %v701
        $region146: #{tpu_custom_call.1} parent=133 // pred_fallthru
          _
        %v712 = vld [vmem:[%s556] sm:$0xf]
        %v713 = vld [vmem:[%s556 + $0x4] sm:$0xf]
        %v714 = vld [vmem:[%s556 + $0x8] sm:$0xf]
        %v715 = vld [vmem:[%s556 + $0xc] sm:$0xf]
        %v716 = vld [vmem:[%s556 + $0x10] sm:$0xf]
        %v717 = vld [vmem:[%s556 + $0x14] sm:$0xf]
        %v718 = vld [vmem:[%s556 + $0x18] sm:$0xf]
        %v719 = vld [vmem:[%s556 + $0x1c] sm:$0xf]
        %v720 = vld [vmem:[%s556 + $0x20] sm:$0xf]
        %v721 = vld [vmem:[%s556 + $0x24] sm:$0xf]
        %v722 = vld [vmem:[%s556 + $0x28] sm:$0xf]
        %v723 = vld [vmem:[%s556 + $0x2c] sm:$0xf]
        %v724 = vld [vmem:[%s556 + $0x30] sm:$0xf]
        %v725 = vld [vmem:[%s556 + $0x34] sm:$0xf]
        %v726 = vld [vmem:[%s556 + $0x38] sm:$0xf]
        %v727 = vld [vmem:[%s556 + $0x3c] sm:$0xf]
        %v728 = vld [vmem:[%s6] sm:$0xf]
        %v729 = vld [vmem:[%s6 + $0x4] sm:$0xf]
        %v730 = vld [vmem:[%s6 + $0x8] sm:$0xf]
        %v731 = vld [vmem:[%s6 + $0xc] sm:$0xf]
        %v748 = vunpack.c.l.b16 %v712
        %v749 = vunpack.c.l.b16 %v713
        %v750 = vunpack.c.l.b16 %v714
        %v751 = vunpack.c.l.b16 %v715
        %v752 = vunpack.c.l.b16 %v716
        %v753 = vunpack.c.l.b16 %v717
        %v754 = vunpack.c.l.b16 %v718
        %v755 = vunpack.c.l.b16 %v719
        %v756 = vunpack.c.l.b16 %v720
        %v757 = vunpack.c.l.b16 %v721
        %v758 = vunpack.c.l.b16 %v722
        %v759 = vunpack.c.l.b16 %v723
        %v760 = vunpack.c.l.b16 %v724
        %v761 = vunpack.c.l.b16 %v725
        %v762 = vunpack.c.l.b16 %v726
        %v763 = vunpack.c.l.b16 %v727
        %v764 = vpack.c.b16 %v749, %v748
        %v765 = vpack.c.b16 %v751, %v750
        %v766 = vpack.c.b16 %v753, %v752
        %v767 = vpack.c.b16 %v755, %v754
        %v768 = vpack.c.b16 %v757, %v756
        %v769 = vpack.c.b16 %v759, %v758
        %v770 = vpack.c.b16 %v761, %v760
        %v771 = vpack.c.b16 %v763, %v762
        %v776 = vunpack.c.l.b16 %v728
        %v777 = vunpack.c.l.b16 %v729
        %v778 = vunpack.c.l.b16 %v730
        %v779 = vunpack.c.l.b16 %v731
        %v780 = vpack.c.b16 %v777, %v776
        %v781 = vpack.c.b16 %v779, %v778
        %vm784 = vcmask 261120
        %v786 = vsel %vm784, %v764, 0
        %v789 = vsel %vm784, %v765, 0
        %v792 = vsel %vm784, %v766, 0
        %v795 = vsel %vm784, %v767, 0
        %v798 = vsel %vm784, %v768, 0
        %v801 = vsel %vm784, %v769, 0
        %v804 = vsel %vm784, %v770, 0
        %v807 = vsel %vm784, %v771, 0
        %809 = vmatprep.subr.bf16.mxu0 0
        %810 = vmatpush1.bf16.msra.mxu0 %v780
        %811 = vmatprep.subr.bf16.mxu0 0
        %812 = vmatpush1.bf16.msra.mxu0 %v781
        %813 = vmatprep.subr.bf16.mxu0 0
        %814 = vmatpush1.bf16.msra.mxu0 0
        %815 = vmatprep.subr.bf16.mxu0 0
        %816 = vmatpush1.bf16.msra.mxu0 0
        %817 = vmatprep.subr.bf16.mxu0 0
        %818 = vmatpush1.bf16.msra.mxu0 0
        %819 = vmatprep.subr.bf16.mxu0 0
        %820 = vmatpush1.bf16.msra.mxu0 0
        %821 = vmatprep.subr.bf16.mxu0 0
        %822 = vmatpush1.bf16.msra.mxu0 0
        %823 = vmatprep.subr.bf16.mxu0 0
        %824 = vmatpush1.bf16.msra.mxu0 0
        %825 = vmatprep.subr.bf16.mxu0 0
        %826 = vmatpush1.bf16.msra.mxu0 0
        %827 = vmatprep.subr.bf16.mxu0 0
        %828 = vmatpush1.bf16.msra.mxu0 0
        %829 = vmatprep.subr.bf16.mxu0 0
        %830 = vmatpush1.bf16.msra.mxu0 0
        %831 = vmatprep.subr.bf16.mxu0 0
        %832 = vmatpush1.bf16.msra.mxu0 0
        %833 = vmatprep.subr.bf16.mxu0 0
        %834 = vmatpush1.bf16.msra.mxu0 0
        %835 = vmatprep.subr.bf16.mxu0 0
        %836 = vmatpush1.bf16.msra.mxu0 0
        %837 = vmatprep.subr.bf16.mxu0 0
        %838 = vmatpush1.bf16.msra.mxu0 0
        %839 = vmatprep.subr.bf16.mxu0 0
        %840 = vmatpush1.bf16.msra.mxu0 0
        %841 = vmatprep.mubr.bf16.mxu0 0
        %842 = vmatmul.mubr.bf16.gmra.mrb[0].mxu0 %v786
        %v843 = vpop.f32.mrb[0].mxu0
        %v844 = vadd.f32 0.0, %v843
        %v845 = vpop.f32.mrb[0].mxu0
        %v846 = vpop.f32.mrb[0].mxu0
        %v847 = vadd.f32 0.0, %v846
        %v848 = vpop.f32.mrb[0].mxu0
        %849 = vmatprep.mubr.bf16.mxu0 0
        %850 = vmatmul.mubr.bf16.gmra.mrb[0].mxu0 %v789
        %v851 = vpop.f32.mrb[0].mxu0
        %v852 = vadd.f32 0.0, %v851
        %v853 = vpop.f32.mrb[0].mxu0
        %v854 = vpop.f32.mrb[0].mxu0
        %v855 = vadd.f32 0.0, %v854
        %v856 = vpop.f32.mrb[0].mxu0
        %857 = vmatprep.mubr.bf16.mxu0 0
        %858 = vmatmul.mubr.bf16.gmra.mrb[0].mxu0 %v792
        %v859 = vpop.f32.mrb[0].mxu0
        %v860 = vadd.f32 0.0, %v859
        %v861 = vpop.f32.mrb[0].mxu0
        %v862 = vpop.f32.mrb[0].mxu0
        %v863 = vadd.f32 0.0, %v862
        %v864 = vpop.f32.mrb[0].mxu0
        %865 = vmatprep.mubr.bf16.mxu0 0
        %866 = vmatmul.mubr.bf16.gmra.mrb[0].mxu0 %v795
        %v867 = vpop.f32.mrb[0].mxu0
        %v868 = vadd.f32 0.0, %v867
        %v869 = vpop.f32.mrb[0].mxu0
        %v870 = vpop.f32.mrb[0].mxu0
        %v871 = vadd.f32 0.0, %v870
        %v872 = vpop.f32.mrb[0].mxu0
        %873 = vmatprep.mubr.bf16.mxu0 0
        %874 = vmatmul.mubr.bf16.gmra.mrb[0].mxu0 %v798
        %v875 = vpop.f32.mrb[0].mxu0
        %v876 = vadd.f32 0.0, %v875
        %v877 = vpop.f32.mrb[0].mxu0
        %v878 = vpop.f32.mrb[0].mxu0
        %v879 = vadd.f32 0.0, %v878
        %v880 = vpop.f32.mrb[0].mxu0
        %881 = vmatprep.mubr.bf16.mxu0 0
        %882 = vmatmul.mubr.bf16.gmra.mrb[0].mxu0 %v801
        %v883 = vpop.f32.mrb[0].mxu0
        %v884 = vadd.f32 0.0, %v883
        %v885 = vpop.f32.mrb[0].mxu0
        %v886 = vpop.f32.mrb[0].mxu0
        %v887 = vadd.f32 0.0, %v886
        %v888 = vpop.f32.mrb[0].mxu0
        %889 = vmatprep.mubr.bf16.mxu0 0
        %890 = vmatmul.mubr.bf16.gmra.mrb[0].mxu0 %v804
        %v891 = vpop.f32.mrb[0].mxu0
        %v892 = vadd.f32 0.0, %v891
        %v893 = vpop.f32.mrb[0].mxu0
        %v894 = vpop.f32.mrb[0].mxu0
        %v895 = vadd.f32 0.0, %v894
        %v896 = vpop.f32.mrb[0].mxu0
        %897 = vmatprep.mubr.bf16.mxu0 0
        %898 = vmatmul.mubr.bf16.gmra.mrb[0].mxu0 %v807
        %v899 = vpop.f32.mrb[0].mxu0
        %v900 = vadd.f32 0.0, %v899
        %v901 = vpop.f32.mrb[0].mxu0
        %v902 = vpop.f32.mrb[0].mxu0
        %v903 = vadd.f32 0.0, %v902
        %v904 = vpop.f32.mrb[0].mxu0
        %905 = vdwg.mxu0
        %922 = vrot.lane.b32.xlu0 %v844, 124
        %v923 = vpop.permute.xlu0 %922
        %924 = vrot.lane.b32.xlu0 %v847, 124
        %v925 = vpop.permute.xlu0 %924
        %926 = vrot.lane.b32.xlu0 %v852, 124
        %v927 = vpop.permute.xlu0 %926
        %928 = vrot.lane.b32.xlu0 %v855, 124
        %v929 = vpop.permute.xlu0 %928
        %930 = vrot.lane.b32.xlu0 %v860, 124
        %v931 = vpop.permute.xlu0 %930
        %932 = vrot.lane.b32.xlu0 %v863, 124
        %v933 = vpop.permute.xlu0 %932
        %934 = vrot.lane.b32.xlu0 %v868, 124
        %v935 = vpop.permute.xlu0 %934
        %936 = vrot.lane.b32.xlu0 %v871, 124
        %v937 = vpop.permute.xlu0 %936
        %938 = vrot.lane.b32.xlu0 %v876, 124
        %v939 = vpop.permute.xlu0 %938
        %940 = vrot.lane.b32.xlu0 %v879, 124
        %v941 = vpop.permute.xlu0 %940
        %942 = vrot.lane.b32.xlu0 %v884, 124
        %v943 = vpop.permute.xlu0 %942
        %944 = vrot.lane.b32.xlu0 %v887, 124
        %v945 = vpop.permute.xlu0 %944
        %946 = vrot.lane.b32.xlu0 %v892, 124
        %v947 = vpop.permute.xlu0 %946
        %948 = vrot.lane.b32.xlu0 %v895, 124
        %v949 = vpop.permute.xlu0 %948
        %950 = vrot.lane.b32.xlu0 %v900, 124
        %v951 = vpop.permute.xlu0 %950
        %952 = vrot.lane.b32.xlu0 %v903, 124
        %v953 = vpop.permute.xlu0 %952
        %v954 = vld [vmem:[%s562] sm:$0xf]
        %v955 = vld [vmem:[%s562 + $0x4] sm:$0xf]
        %v956 = vld [vmem:[%s562 + $0x8] sm:$0xf]
        %v957 = vld [vmem:[%s562 + $0xc] sm:$0xf]
        %v958 = vld [vmem:[%s562 + $0x10] sm:$0xf]
        %v959 = vld [vmem:[%s562 + $0x14] sm:$0xf]
        %v960 = vld [vmem:[%s562 + $0x18] sm:$0xf]
        %v961 = vld [vmem:[%s562 + $0x1c] sm:$0xf]
        %v962 = vld [vmem:[%s562 + $0x20] sm:$0xf]
        %v963 = vld [vmem:[%s562 + $0x24] sm:$0xf]
        %v964 = vld [vmem:[%s562 + $0x28] sm:$0xf]
        %v965 = vld [vmem:[%s562 + $0x2c] sm:$0xf]
        %v966 = vld [vmem:[%s562 + $0x30] sm:$0xf]
        %v967 = vld [vmem:[%s562 + $0x34] sm:$0xf]
        %v968 = vld [vmem:[%s562 + $0x38] sm:$0xf]
        %v969 = vld [vmem:[%s562 + $0x3c] sm:$0xf]
        %v970 = vld [vmem:[%s568] sm:$0xf]
        %v971 = vld [vmem:[%s568 + $0x4] sm:$0xf]
        %v972 = vld [vmem:[%s568 + $0x8] sm:$0xf]
        %v973 = vld [vmem:[%s568 + $0xc] sm:$0xf]
        %v974 = vld [vmem:[%s568 + $0x10] sm:$0xf]
        %v975 = vld [vmem:[%s568 + $0x14] sm:$0xf]
        %v976 = vld [vmem:[%s568 + $0x18] sm:$0xf]
        %v977 = vld [vmem:[%s568 + $0x1c] sm:$0xf]
        %v978 = vld [vmem:[%s568 + $0x20] sm:$0xf]
        %v979 = vld [vmem:[%s568 + $0x24] sm:$0xf]
        %v980 = vld [vmem:[%s568 + $0x28] sm:$0xf]
        %v981 = vld [vmem:[%s568 + $0x2c] sm:$0xf]
        %v982 = vld [vmem:[%s568 + $0x30] sm:$0xf]
        %v983 = vld [vmem:[%s568 + $0x34] sm:$0xf]
        %v984 = vld [vmem:[%s568 + $0x38] sm:$0xf]
        %v985 = vld [vmem:[%s568 + $0x3c] sm:$0xf]
        %v1002 = vunpack.c.l.b16 %v954
        %v1003 = vunpack.c.l.b16 %v955
        %v1004 = vunpack.c.l.b16 %v956
        %v1005 = vunpack.c.l.b16 %v957
        %v1006 = vunpack.c.l.b16 %v958
        %v1007 = vunpack.c.l.b16 %v959
        %v1008 = vunpack.c.l.b16 %v960
        %v1009 = vunpack.c.l.b16 %v961
        %v1010 = vunpack.c.l.b16 %v962
        %v1011 = vunpack.c.l.b16 %v963
        %v1012 = vunpack.c.l.b16 %v964
        %v1013 = vunpack.c.l.b16 %v965
        %v1014 = vunpack.c.l.b16 %v966
        %v1015 = vunpack.c.l.b16 %v967
        %v1016 = vunpack.c.l.b16 %v968
        %v1017 = vunpack.c.l.b16 %v969
        %v1018 = vpack.c.b16 %v1003, %v1002
        %v1019 = vpack.c.b16 %v1005, %v1004
        %v1020 = vpack.c.b16 %v1007, %v1006
        %v1021 = vpack.c.b16 %v1009, %v1008
        %v1022 = vpack.c.b16 %v1011, %v1010
        %v1023 = vpack.c.b16 %v1013, %v1012
        %v1024 = vpack.c.b16 %v1015, %v1014
        %v1025 = vpack.c.b16 %v1017, %v1016
        %v1042 = vunpack.c.l.b16 %v970
        %v1043 = vunpack.c.l.b16 %v971
        %v1044 = vunpack.c.l.b16 %v972
        %v1045 = vunpack.c.l.b16 %v973
        %v1046 = vunpack.c.l.b16 %v974
        %v1047 = vunpack.c.l.b16 %v975
        %v1048 = vunpack.c.l.b16 %v976
        %v1049 = vunpack.c.l.b16 %v977
        %v1050 = vunpack.c.l.b16 %v978
        %v1051 = vunpack.c.l.b16 %v979
        %v1052 = vunpack.c.l.b16 %v980
        %v1053 = vunpack.c.l.b16 %v981
        %v1054 = vunpack.c.l.b16 %v982
        %v1055 = vunpack.c.l.b16 %v983
        %v1056 = vunpack.c.l.b16 %v984
        %v1057 = vunpack.c.l.b16 %v985
        %v1058 = vpack.c.b16 %v1043, %v1042
        %v1059 = vpack.c.b16 %v1045, %v1044
        %v1060 = vpack.c.b16 %v1047, %v1046
        %v1061 = vpack.c.b16 %v1049, %v1048
        %v1062 = vpack.c.b16 %v1051, %v1050
        %v1063 = vpack.c.b16 %v1053, %v1052
        %v1064 = vpack.c.b16 %v1055, %v1054
        %v1065 = vpack.c.b16 %v1057, %v1056
        %v1066 = vld [vmem:[%s7] sm:$0xff]
        %v1067 = vld [vmem:[%s7 + $0x8] sm:$0xff]
        %v1068 = vld [vmem:[%s7 + $0x10] sm:$0xff]
        %v1069 = vld [vmem:[%s7 + $0x18] sm:$0xff]
        %v1070 = vld [vmem:[%s7 + $0x20] sm:$0xff]
        %v1071 = vld [vmem:[%s7 + $0x28] sm:$0xff]
        %v1072 = vld [vmem:[%s7 + $0x30] sm:$0xff]
        %v1073 = vld [vmem:[%s7 + $0x38] sm:$0xff]
        %v1082 = vunpack.c.l.b16 %v1066
        %v1083 = vunpack.c.h.b16 %v1066
        %v1084 = vunpack.c.l.b16 %v1067
        %v1085 = vunpack.c.h.b16 %v1067
        %v1086 = vunpack.c.l.b16 %v1068
        %v1087 = vunpack.c.h.b16 %v1068
        %v1088 = vunpack.c.l.b16 %v1069
        %v1089 = vunpack.c.h.b16 %v1069
        %v1090 = vunpack.c.l.b16 %v1070
        %v1091 = vunpack.c.h.b16 %v1070
        %v1092 = vunpack.c.l.b16 %v1071
        %v1093 = vunpack.c.h.b16 %v1071
        %v1094 = vunpack.c.l.b16 %v1072
        %v1095 = vunpack.c.h.b16 %v1072
        %v1096 = vunpack.c.l.b16 %v1073
        %v1097 = vunpack.c.h.b16 %v1073
        %v1098 = vpack.c.b16 %v1086, %v1082
        %v1099 = vpack.c.b16 %v1087, %v1083
        %v1100 = vpack.c.b16 %v1088, %v1084
        %v1101 = vpack.c.b16 %v1089, %v1085
        %v1102 = vpack.c.b16 %v1094, %v1090
        %v1103 = vpack.c.b16 %v1095, %v1091
        %v1104 = vpack.c.b16 %v1096, %v1092
        %v1105 = vpack.c.b16 %v1097, %v1093
        %v1115 = vsel %vm784, %v1018, 0
        %v1118 = vsel %vm784, %v1019, 0
        %v1121 = vsel %vm784, %v1020, 0
        %v1124 = vsel %vm784, %v1021, 0
        %v1127 = vsel %vm784, %v1022, 0
        %v1130 = vsel %vm784, %v1023, 0
        %v1133 = vsel %vm784, %v1024, 0
        %v1136 = vsel %vm784, %v1025, 0
        %v1139 = vsel %vm784, %v1058, 0
        %v1142 = vsel %vm784, %v1059, 0
        %v1145 = vsel %vm784, %v1060, 0
        %v1148 = vsel %vm784, %v1061, 0
        %v1151 = vsel %vm784, %v1062, 0
        %v1154 = vsel %vm784, %v1063, 0
        %v1157 = vsel %vm784, %v1064, 0
        %v1160 = vsel %vm784, %v1065, 0
        %1162 = vmatprep.subr.bf16.mxu0 %v1099
        %1163 = vmatpush1.bf16.msra.mxu0 %v1098
        %1164 = vmatprep.subr.bf16.mxu0 %v1103
        %1165 = vmatpush1.bf16.msra.mxu0 %v1102
        %1166 = vmatprep.subr.bf16.mxu0 0
        %1167 = vmatpush1.bf16.msra.mxu0 0
        %1168 = vmatprep.subr.bf16.mxu0 0
        %1169 = vmatpush1.bf16.msra.mxu0 0
        %1170 = vmatprep.subr.bf16.mxu0 0
        %1171 = vmatpush1.bf16.msra.mxu0 0
        %1172 = vmatprep.subr.bf16.mxu0 0
        %1173 = vmatpush1.bf16.msra.mxu0 0
        %1174 = vmatprep.subr.bf16.mxu0 0
        %1175 = vmatpush1.bf16.msra.mxu0 0
        %1176 = vmatprep.subr.bf16.mxu0 0
        %1177 = vmatpush1.bf16.msra.mxu0 0
        %1178 = vmatprep.subr.bf16.mxu0 0
        %1179 = vmatpush1.bf16.msra.mxu0 0
        %1180 = vmatprep.subr.bf16.mxu0 0
        %1181 = vmatpush1.bf16.msra.mxu0 0
        %1182 = vmatprep.subr.bf16.mxu0 0
        %1183 = vmatpush1.bf16.msra.mxu0 0
        %1184 = vmatprep.subr.bf16.mxu0 0
        %1185 = vmatpush1.bf16.msra.mxu0 0
        %1186 = vmatprep.subr.bf16.mxu0 0
        %1187 = vmatpush1.bf16.msra.mxu0 0
        %1188 = vmatprep.subr.bf16.mxu0 0
        %1189 = vmatpush1.bf16.msra.mxu0 0
        %1190 = vmatprep.subr.bf16.mxu0 0
        %1191 = vmatpush1.bf16.msra.mxu0 0
        %1192 = vmatprep.subr.bf16.mxu0 0
        %1193 = vmatpush1.bf16.msra.mxu0 0
        %1194 = vmatprep.mubr.bf16.mxu0 0
        %1195 = vmatmul.mubr.bf16.gmra.mrb[0].mxu0 %v1115
        %v1196 = vpop.f32.mrb[0].mxu0
        %v1197 = vadd.f32 0.0, %v1196
        %v1198 = vpop.f32.mrb[0].mxu0
        %v1199 = vadd.f32 0.0, %v1198
        %v1200 = vpop.f32.mrb[0].mxu0
        %v1201 = vadd.f32 0.0, %v1200
        %v1202 = vpop.f32.mrb[0].mxu0
        %v1203 = vadd.f32 0.0, %v1202
        %1204 = vmatprep.mubr.bf16.mxu0 0
        %1205 = vmatmul.mubr.bf16.gmra.mrb[0].mxu0 %v1118
        %v1206 = vpop.f32.mrb[0].mxu0
        %v1207 = vadd.f32 0.0, %v1206
        %v1208 = vpop.f32.mrb[0].mxu0
        %v1209 = vadd.f32 0.0, %v1208
        %v1210 = vpop.f32.mrb[0].mxu0
        %v1211 = vadd.f32 0.0, %v1210
        %v1212 = vpop.f32.mrb[0].mxu0
        %v1213 = vadd.f32 0.0, %v1212
        %1214 = vmatprep.mubr.bf16.mxu0 0
        %1215 = vmatmul.mubr.bf16.gmra.mrb[0].mxu0 %v1121
        %v1216 = vpop.f32.mrb[0].mxu0
        %v1217 = vadd.f32 0.0, %v1216
        %v1218 = vpop.f32.mrb[0].mxu0
        %v1219 = vadd.f32 0.0, %v1218
        %v1220 = vpop.f32.mrb[0].mxu0
        %v1221 = vadd.f32 0.0, %v1220
        %v1222 = vpop.f32.mrb[0].mxu0
        %v1223 = vadd.f32 0.0, %v1222
        %1224 = vmatprep.mubr.bf16.mxu0 0
        %1225 = vmatmul.mubr.bf16.gmra.mrb[0].mxu0 %v1124
        %v1226 = vpop.f32.mrb[0].mxu0
        %v1227 = vadd.f32 0.0, %v1226
        %v1228 = vpop.f32.mrb[0].mxu0
        %v1229 = vadd.f32 0.0, %v1228
        %v1230 = vpop.f32.mrb[0].mxu0
        %v1231 = vadd.f32 0.0, %v1230
        %v1232 = vpop.f32.mrb[0].mxu0
        %v1233 = vadd.f32 0.0, %v1232
        %1234 = vmatprep.mubr.bf16.mxu0 0
        %1235 = vmatmul.mubr.bf16.gmra.mrb[0].mxu0 %v1127
        %v1236 = vpop.f32.mrb[0].mxu0
        %v1237 = vadd.f32 0.0, %v1236
        %v1238 = vpop.f32.mrb[0].mxu0
        %v1239 = vadd.f32 0.0, %v1238
        %v1240 = vpop.f32.mrb[0].mxu0
        %v1241 = vadd.f32 0.0, %v1240
        %v1242 = vpop.f32.mrb[0].mxu0
        %v1243 = vadd.f32 0.0, %v1242
        %1244 = vmatprep.mubr.bf16.mxu0 0
        %1245 = vmatmul.mubr.bf16.gmra.mrb[0].mxu0 %v1130
        %v1246 = vpop.f32.mrb[0].mxu0
        %v1247 = vadd.f32 0.0, %v1246
        %v1248 = vpop.f32.mrb[0].mxu0
        %v1249 = vadd.f32 0.0, %v1248
        %v1250 = vpop.f32.mrb[0].mxu0
        %v1251 = vadd.f32 0.0, %v1250
        %v1252 = vpop.f32.mrb[0].mxu0
        %v1253 = vadd.f32 0.0, %v1252
        %1254 = vmatprep.mubr.bf16.mxu0 0
        %1255 = vmatmul.mubr.bf16.gmra.mrb[0].mxu0 %v1133
        %v1256 = vpop.f32.mrb[0].mxu0
        %v1257 = vadd.f32 0.0, %v1256
        %v1258 = vpop.f32.mrb[0].mxu0
        %v1259 = vadd.f32 0.0, %v1258
        %v1260 = vpop.f32.mrb[0].mxu0
        %v1261 = vadd.f32 0.0, %v1260
        %v1262 = vpop.f32.mrb[0].mxu0
        %v1263 = vadd.f32 0.0, %v1262
        %1264 = vmatprep.mubr.bf16.mxu0 0
        %1265 = vmatmul.mubr.bf16.gmra.mrb[0].mxu0 %v1136
        %v1266 = vpop.f32.mrb[0].mxu0
        %v1267 = vadd.f32 0.0, %v1266
        %v1268 = vpop.f32.mrb[0].mxu0
        %v1269 = vadd.f32 0.0, %v1268
        %v1270 = vpop.f32.mrb[0].mxu0
        %v1271 = vadd.f32 0.0, %v1270
        %v1272 = vpop.f32.mrb[0].mxu0
        %v1273 = vadd.f32 0.0, %v1272
        %1274 = vmatprep.mubr.bf16.mxu0 0
        %1275 = vmatmul.mubr.bf16.gmra.mrb[0].mxu0 %v1139
        %v1276 = vpop.f32.mrb[0].mxu0
        %v1277 = vadd.f32 0.0, %v1276
        %v1278 = vpop.f32.mrb[0].mxu0
        %v1279 = vadd.f32 0.0, %v1278
        %v1280 = vpop.f32.mrb[0].mxu0
        %v1281 = vadd.f32 0.0, %v1280
        %v1282 = vpop.f32.mrb[0].mxu0
        %v1283 = vadd.f32 0.0, %v1282
        %1284 = vmatprep.mubr.bf16.mxu0 0
        %1285 = vmatmul.mubr.bf16.gmra.mrb[0].mxu0 %v1142
        %v1286 = vpop.f32.mrb[0].mxu0
        %v1287 = vadd.f32 0.0, %v1286
        %v1288 = vpop.f32.mrb[0].mxu0
        %v1289 = vadd.f32 0.0, %v1288
        %v1290 = vpop.f32.mrb[0].mxu0
        %v1291 = vadd.f32 0.0, %v1290
        %v1292 = vpop.f32.mrb[0].mxu0
        %v1293 = vadd.f32 0.0, %v1292
        %1294 = vmatprep.mubr.bf16.mxu0 0
        %1295 = vmatmul.mubr.bf16.gmra.mrb[0].mxu0 %v1145
        %v1296 = vpop.f32.mrb[0].mxu0
        %v1297 = vadd.f32 0.0, %v1296
        %v1298 = vpop.f32.mrb[0].mxu0
        %v1299 = vadd.f32 0.0, %v1298
        %v1300 = vpop.f32.mrb[0].mxu0
        %v1301 = vadd.f32 0.0, %v1300
        %v1302 = vpop.f32.mrb[0].mxu0
        %v1303 = vadd.f32 0.0, %v1302
        %1304 = vmatprep.mubr.bf16.mxu0 0
        %1305 = vmatmul.mubr.bf16.gmra.mrb[0].mxu0 %v1148
        %v1306 = vpop.f32.mrb[0].mxu0
        %v1307 = vadd.f32 0.0, %v1306
        %v1308 = vpop.f32.mrb[0].mxu0
        %v1309 = vadd.f32 0.0, %v1308
        %v1310 = vpop.f32.mrb[0].mxu0
        %v1311 = vadd.f32 0.0, %v1310
        %v1312 = vpop.f32.mrb[0].mxu0
        %v1313 = vadd.f32 0.0, %v1312
        %1314 = vmatprep.mubr.bf16.mxu0 0
        %1315 = vmatmul.mubr.bf16.gmra.mrb[0].mxu0 %v1151
        %v1316 = vpop.f32.mrb[0].mxu0
        %v1317 = vadd.f32 0.0, %v1316
        %v1318 = vpop.f32.mrb[0].mxu0
        %v1319 = vadd.f32 0.0, %v1318
        %v1320 = vpop.f32.mrb[0].mxu0
        %v1321 = vadd.f32 0.0, %v1320
        %v1322 = vpop.f32.mrb[0].mxu0
        %v1323 = vadd.f32 0.0, %v1322
        %1324 = vmatprep.mubr.bf16.mxu0 0
        %1325 = vmatmul.mubr.bf16.gmra.mrb[0].mxu0 %v1154
        %v1326 = vpop.f32.mrb[0].mxu0
        %v1327 = vadd.f32 0.0, %v1326
        %v1328 = vpop.f32.mrb[0].mxu0
        %v1329 = vadd.f32 0.0, %v1328
        %v1330 = vpop.f32.mrb[0].mxu0
        %v1331 = vadd.f32 0.0, %v1330
        %v1332 = vpop.f32.mrb[0].mxu0
        %v1333 = vadd.f32 0.0, %v1332
        %1334 = vmatprep.mubr.bf16.mxu0 0
        %1335 = vmatmul.mubr.bf16.gmra.mrb[0].mxu0 %v1157
        %v1336 = vpop.f32.mrb[0].mxu0
        %v1337 = vadd.f32 0.0, %v1336
        %v1338 = vpop.f32.mrb[0].mxu0
        %v1339 = vadd.f32 0.0, %v1338
        %v1340 = vpop.f32.mrb[0].mxu0
        %v1341 = vadd.f32 0.0, %v1340
        %v1342 = vpop.f32.mrb[0].mxu0
        %v1343 = vadd.f32 0.0, %v1342
        %1344 = vmatprep.mubr.bf16.mxu0 0
        %1345 = vmatmul.mubr.bf16.gmra.mrb[0].mxu0 %v1160
        %v1346 = vpop.f32.mrb[0].mxu0
        %v1347 = vadd.f32 0.0, %v1346
        %v1348 = vpop.f32.mrb[0].mxu0
        %v1349 = vadd.f32 0.0, %v1348
        %v1350 = vpop.f32.mrb[0].mxu0
        %v1351 = vadd.f32 0.0, %v1350
        %v1352 = vpop.f32.mrb[0].mxu0
        %v1353 = vadd.f32 0.0, %v1352
        %1354 = vdwg.mxu0
        %1355 = vmatprep.subr.bf16.mxu0 %v1101
        %1356 = vmatpush1.bf16.msra.mxu0 %v1100
        %1357 = vmatprep.subr.bf16.mxu0 %v1105
        %1358 = vmatpush1.bf16.msra.mxu0 %v1104
        %1359 = vmatprep.subr.bf16.mxu0 0
        %1360 = vmatpush1.bf16.msra.mxu0 0
        %1361 = vmatprep.subr.bf16.mxu0 0
        %1362 = vmatpush1.bf16.msra.mxu0 0
        %1363 = vmatprep.subr.bf16.mxu0 0
        %1364 = vmatpush1.bf16.msra.mxu0 0
        %1365 = vmatprep.subr.bf16.mxu0 0
        %1366 = vmatpush1.bf16.msra.mxu0 0
        %1367 = vmatprep.subr.bf16.mxu0 0
        %1368 = vmatpush1.bf16.msra.mxu0 0
        %1369 = vmatprep.subr.bf16.mxu0 0
        %1370 = vmatpush1.bf16.msra.mxu0 0
        %1371 = vmatprep.subr.bf16.mxu0 0
        %1372 = vmatpush1.bf16.msra.mxu0 0
        %1373 = vmatprep.subr.bf16.mxu0 0
        %1374 = vmatpush1.bf16.msra.mxu0 0
        %1375 = vmatprep.subr.bf16.mxu0 0
        %1376 = vmatpush1.bf16.msra.mxu0 0
        %1377 = vmatprep.subr.bf16.mxu0 0
        %1378 = vmatpush1.bf16.msra.mxu0 0
        %1379 = vmatprep.subr.bf16.mxu0 0
        %1380 = vmatpush1.bf16.msra.mxu0 0
        %1381 = vmatprep.subr.bf16.mxu0 0
        %1382 = vmatpush1.bf16.msra.mxu0 0
        %1383 = vmatprep.subr.bf16.mxu0 0
        %1384 = vmatpush1.bf16.msra.mxu0 0
        %1385 = vmatprep.subr.bf16.mxu0 0
        %1386 = vmatpush1.bf16.msra.mxu0 0
        %1387 = vmatprep.mubr.bf16.mxu0 0
        %1388 = vmatmul.mubr.bf16.gmra.mrb[0].mxu0 %v1115
        %v1389 = vpop.f32.mrb[0].mxu0
        %v1390 = vadd.f32 0.0, %v1389
        %v1391 = vpop.f32.mrb[0].mxu0
        %v1392 = vadd.f32 0.0, %v1391
        %v1393 = vpop.f32.mrb[0].mxu0
        %v1394 = vadd.f32 0.0, %v1393
        %v1395 = vpop.f32.mrb[0].mxu0
        %v1396 = vadd.f32 0.0, %v1395
        %1397 = vmatprep.mubr.bf16.mxu0 0
        %1398 = vmatmul.mubr.bf16.gmra.mrb[0].mxu0 %v1118
        %v1399 = vpop.f32.mrb[0].mxu0
        %v1400 = vadd.f32 0.0, %v1399
        %v1401 = vpop.f32.mrb[0].mxu0
        %v1402 = vadd.f32 0.0, %v1401
        %v1403 = vpop.f32.mrb[0].mxu0
        %v1404 = vadd.f32 0.0, %v1403
        %v1405 = vpop.f32.mrb[0].mxu0
        %v1406 = vadd.f32 0.0, %v1405
        %1407 = vmatprep.mubr.bf16.mxu0 0
        %1408 = vmatmul.mubr.bf16.gmra.mrb[0].mxu0 %v1121
        %v1409 = vpop.f32.mrb[0].mxu0
        %v1410 = vadd.f32 0.0, %v1409
        %v1411 = vpop.f32.mrb[0].mxu0
        %v1412 = vadd.f32 0.0, %v1411
        %v1413 = vpop.f32.mrb[0].mxu0
        %v1414 = vadd.f32 0.0, %v1413
        %v1415 = vpop.f32.mrb[0].mxu0
        %v1416 = vadd.f32 0.0, %v1415
        %1417 = vmatprep.mubr.bf16.mxu0 0
        %1418 = vmatmul.mubr.bf16.gmra.mrb[0].mxu0 %v1124
        %v1419 = vpop.f32.mrb[0].mxu0
        %v1420 = vadd.f32 0.0, %v1419
        %v1421 = vpop.f32.mrb[0].mxu0
        %v1422 = vadd.f32 0.0, %v1421
        %v1423 = vpop.f32.mrb[0].mxu0
        %v1424 = vadd.f32 0.0, %v1423
        %v1425 = vpop.f32.mrb[0].mxu0
        %v1426 = vadd.f32 0.0, %v1425
        %1427 = vmatprep.mubr.bf16.mxu0 0
        %1428 = vmatmul.mubr.bf16.gmra.mrb[0].mxu0 %v1127
        %v1429 = vpop.f32.mrb[0].mxu0
        %v1430 = vadd.f32 0.0, %v1429
        %v1431 = vpop.f32.mrb[0].mxu0
        %v1432 = vadd.f32 0.0, %v1431
        %v1433 = vpop.f32.mrb[0].mxu0
        %v1434 = vadd.f32 0.0, %v1433
        %v1435 = vpop.f32.mrb[0].mxu0
        %v1436 = vadd.f32 0.0, %v1435
        %1437 = vmatprep.mubr.bf16.mxu0 0
        %1438 = vmatmul.mubr.bf16.gmra.mrb[0].mxu0 %v1130
        %v1439 = vpop.f32.mrb[0].mxu0
        %v1440 = vadd.f32 0.0, %v1439
        %v1441 = vpop.f32.mrb[0].mxu0
        %v1442 = vadd.f32 0.0, %v1441
        %v1443 = vpop.f32.mrb[0].mxu0
        %v1444 = vadd.f32 0.0, %v1443
        %v1445 = vpop.f32.mrb[0].mxu0
        %v1446 = vadd.f32 0.0, %v1445
        %1447 = vmatprep.mubr.bf16.mxu0 0
        %1448 = vmatmul.mubr.bf16.gmra.mrb[0].mxu0 %v1133
        %v1449 = vpop.f32.mrb[0].mxu0
        %v1450 = vadd.f32 0.0, %v1449
        %v1451 = vpop.f32.mrb[0].mxu0
        %v1452 = vadd.f32 0.0, %v1451
        %v1453 = vpop.f32.mrb[0].mxu0
        %v1454 = vadd.f32 0.0, %v1453
        %v1455 = vpop.f32.mrb[0].mxu0
        %v1456 = vadd.f32 0.0, %v1455
        %1457 = vmatprep.mubr.bf16.mxu0 0
        %1458 = vmatmul.mubr.bf16.gmra.mrb[0].mxu0 %v1136
        %v1459 = vpop.f32.mrb[0].mxu0
        %v1460 = vadd.f32 0.0, %v1459
        %v1461 = vpop.f32.mrb[0].mxu0
        %v1462 = vadd.f32 0.0, %v1461
        %v1463 = vpop.f32.mrb[0].mxu0
        %v1464 = vadd.f32 0.0, %v1463
        %v1465 = vpop.f32.mrb[0].mxu0
        %v1466 = vadd.f32 0.0, %v1465
        %1467 = vmatprep.mubr.bf16.mxu0 0
        %1468 = vmatmul.mubr.bf16.gmra.mrb[0].mxu0 %v1139
        %v1469 = vpop.f32.mrb[0].mxu0
        %v1470 = vadd.f32 0.0, %v1469
        %v1471 = vpop.f32.mrb[0].mxu0
        %v1472 = vadd.f32 0.0, %v1471
        %v1473 = vpop.f32.mrb[0].mxu0
        %v1474 = vadd.f32 0.0, %v1473
        %v1475 = vpop.f32.mrb[0].mxu0
        %v1476 = vadd.f32 0.0, %v1475
        %1477 = vmatprep.mubr.bf16.mxu0 0
        %1478 = vmatmul.mubr.bf16.gmra.mrb[0].mxu0 %v1142
        %v1479 = vpop.f32.mrb[0].mxu0
        %v1480 = vadd.f32 0.0, %v1479
        %v1481 = vpop.f32.mrb[0].mxu0
        %v1482 = vadd.f32 0.0, %v1481
        %v1483 = vpop.f32.mrb[0].mxu0
        %v1484 = vadd.f32 0.0, %v1483
        %v1485 = vpop.f32.mrb[0].mxu0
        %v1486 = vadd.f32 0.0, %v1485
        %1487 = vmatprep.mubr.bf16.mxu0 0
        %1488 = vmatmul.mubr.bf16.gmra.mrb[0].mxu0 %v1145
        %v1489 = vpop.f32.mrb[0].mxu0
        %v1490 = vadd.f32 0.0, %v1489
        %v1491 = vpop.f32.mrb[0].mxu0
        %v1492 = vadd.f32 0.0, %v1491
        %v1493 = vpop.f32.mrb[0].mxu0
        %v1494 = vadd.f32 0.0, %v1493
        %v1495 = vpop.f32.mrb[0].mxu0
        %v1496 = vadd.f32 0.0, %v1495
        %1497 = vmatprep.mubr.bf16.mxu0 0
        %1498 = vmatmul.mubr.bf16.gmra.mrb[0].mxu0 %v1148
        %v1499 = vpop.f32.mrb[0].mxu0
        %v1500 = vadd.f32 0.0, %v1499
        %v1501 = vpop.f32.mrb[0].mxu0
        %v1502 = vadd.f32 0.0, %v1501
        %v1503 = vpop.f32.mrb[0].mxu0
        %v1504 = vadd.f32 0.0, %v1503
        %v1505 = vpop.f32.mrb[0].mxu0
        %v1506 = vadd.f32 0.0, %v1505
        %1507 = vmatprep.mubr.bf16.mxu0 0
        %1508 = vmatmul.mubr.bf16.gmra.mrb[0].mxu0 %v1151
        %v1509 = vpop.f32.mrb[0].mxu0
        %v1510 = vadd.f32 0.0, %v1509
        %v1511 = vpop.f32.mrb[0].mxu0
        %v1512 = vadd.f32 0.0, %v1511
        %v1513 = vpop.f32.mrb[0].mxu0
        %v1514 = vadd.f32 0.0, %v1513
        %v1515 = vpop.f32.mrb[0].mxu0
        %v1516 = vadd.f32 0.0, %v1515
        %1517 = vmatprep.mubr.bf16.mxu0 0
        %1518 = vmatmul.mubr.bf16.gmra.mrb[0].mxu0 %v1154
        %v1519 = vpop.f32.mrb[0].mxu0
        %v1520 = vadd.f32 0.0, %v1519
        %v1521 = vpop.f32.mrb[0].mxu0
        %v1522 = vadd.f32 0.0, %v1521
        %v1523 = vpop.f32.mrb[0].mxu0
        %v1524 = vadd.f32 0.0, %v1523
        %v1525 = vpop.f32.mrb[0].mxu0
        %v1526 = vadd.f32 0.0, %v1525
        %1527 = vmatprep.mubr.bf16.mxu0 0
        %1528 = vmatmul.mubr.bf16.gmra.mrb[0].mxu0 %v1157
        %v1529 = vpop.f32.mrb[0].mxu0
        %v1530 = vadd.f32 0.0, %v1529
        %v1531 = vpop.f32.mrb[0].mxu0
        %v1532 = vadd.f32 0.0, %v1531
        %v1533 = vpop.f32.mrb[0].mxu0
        %v1534 = vadd.f32 0.0, %v1533
        %v1535 = vpop.f32.mrb[0].mxu0
        %v1536 = vadd.f32 0.0, %v1535
        %1537 = vmatprep.mubr.bf16.mxu0 0
        %1538 = vmatmul.mubr.bf16.gmra.mrb[0].mxu0 %v1160
        %v1539 = vpop.f32.mrb[0].mxu0
        %v1540 = vadd.f32 0.0, %v1539
        %v1541 = vpop.f32.mrb[0].mxu0
        %v1542 = vadd.f32 0.0, %v1541
        %v1543 = vpop.f32.mrb[0].mxu0
        %v1544 = vadd.f32 0.0, %v1543
        %v1545 = vpop.f32.mrb[0].mxu0
        %v1546 = vadd.f32 0.0, %v1545
        %1547 = vdwg.mxu0
        %1548 = vset.pattern.permute.xlu0 0
        %1549 = vperm.xlu0 %1548, %v844
        %v1550 = vpop.permute.xlu0 %1549
        %1552 = vset.pattern.permute.xlu0 0
        %1553 = vperm.xlu0 %1552, %v847
        %v1554 = vpop.permute.xlu0 %1553
        %1556 = vset.pattern.permute.xlu0 0
        %1557 = vperm.xlu0 %1556, %v852
        %v1558 = vpop.permute.xlu0 %1557
        %1560 = vset.pattern.permute.xlu0 0
        %1561 = vperm.xlu0 %1560, %v855
        %v1562 = vpop.permute.xlu0 %1561
        %1564 = vset.pattern.permute.xlu0 0
        %1565 = vperm.xlu0 %1564, %v860
        %v1566 = vpop.permute.xlu0 %1565
        %1568 = vset.pattern.permute.xlu0 0
        %1569 = vperm.xlu0 %1568, %v863
        %v1570 = vpop.permute.xlu0 %1569
        %1572 = vset.pattern.permute.xlu0 0
        %1573 = vperm.xlu0 %1572, %v868
        %v1574 = vpop.permute.xlu0 %1573
        %1576 = vset.pattern.permute.xlu0 0
        %1577 = vperm.xlu0 %1576, %v871
        %v1578 = vpop.permute.xlu0 %1577
        %1580 = vset.pattern.permute.xlu0 0
        %1581 = vperm.xlu0 %1580, %v876
        %v1582 = vpop.permute.xlu0 %1581
        %1584 = vset.pattern.permute.xlu0 0
        %1585 = vperm.xlu0 %1584, %v879
        %v1586 = vpop.permute.xlu0 %1585
        %1588 = vset.pattern.permute.xlu0 0
        %1589 = vperm.xlu0 %1588, %v884
        %v1590 = vpop.permute.xlu0 %1589
        %1592 = vset.pattern.permute.xlu0 0
        %1593 = vperm.xlu0 %1592, %v887
        %v1594 = vpop.permute.xlu0 %1593
        %1596 = vset.pattern.permute.xlu0 0
        %1597 = vperm.xlu0 %1596, %v892
        %v1598 = vpop.permute.xlu0 %1597
        %1600 = vset.pattern.permute.xlu0 0
        %1601 = vperm.xlu0 %1600, %v895
        %v1602 = vpop.permute.xlu0 %1601
        %1604 = vset.pattern.permute.xlu0 0
        %1605 = vperm.xlu0 %1604, %v900
        %v1606 = vpop.permute.xlu0 %1605
        %1608 = vset.pattern.permute.xlu0 0
        %1609 = vperm.xlu0 %1608, %v903
        %v1610 = vpop.permute.xlu0 %1609
        %1612 = vset.pattern.permute.xlu0 0
        %1613 = vperm.xlu0 %1612, %v923
        %v1614 = vpop.permute.xlu0 %1613
        %1616 = vset.pattern.permute.xlu0 0
        %1617 = vperm.xlu0 %1616, %v925
        %v1618 = vpop.permute.xlu0 %1617
        %1620 = vset.pattern.permute.xlu0 0
        %1621 = vperm.xlu0 %1620, %v927
        %v1622 = vpop.permute.xlu0 %1621
        %1624 = vset.pattern.permute.xlu0 0
        %1625 = vperm.xlu0 %1624, %v929
        %v1626 = vpop.permute.xlu0 %1625
        %1628 = vset.pattern.permute.xlu0 0
        %1629 = vperm.xlu0 %1628, %v931
        %v1630 = vpop.permute.xlu0 %1629
        %1632 = vset.pattern.permute.xlu0 0
        %1633 = vperm.xlu0 %1632, %v933
        %v1634 = vpop.permute.xlu0 %1633
        %1636 = vset.pattern.permute.xlu0 0
        %1637 = vperm.xlu0 %1636, %v935
        %v1638 = vpop.permute.xlu0 %1637
        %1640 = vset.pattern.permute.xlu0 0
        %1641 = vperm.xlu0 %1640, %v937
        %v1642 = vpop.permute.xlu0 %1641
        %1644 = vset.pattern.permute.xlu0 0
        %1645 = vperm.xlu0 %1644, %v939
        %v1646 = vpop.permute.xlu0 %1645
        %1648 = vset.pattern.permute.xlu0 0
        %1649 = vperm.xlu0 %1648, %v941
        %v1650 = vpop.permute.xlu0 %1649
        %1652 = vset.pattern.permute.xlu0 0
        %1653 = vperm.xlu0 %1652, %v943
        %v1654 = vpop.permute.xlu0 %1653
        %1656 = vset.pattern.permute.xlu0 0
        %1657 = vperm.xlu0 %1656, %v945
        %v1658 = vpop.permute.xlu0 %1657
        %1660 = vset.pattern.permute.xlu0 0
        %1661 = vperm.xlu0 %1660, %v947
        %v1662 = vpop.permute.xlu0 %1661
        %1664 = vset.pattern.permute.xlu0 0
        %1665 = vperm.xlu0 %1664, %v949
        %v1666 = vpop.permute.xlu0 %1665
        %1668 = vset.pattern.permute.xlu0 0
        %1669 = vperm.xlu0 %1668, %v951
        %v1670 = vpop.permute.xlu0 %1669
        %1672 = vset.pattern.permute.xlu0 0
        %1673 = vperm.xlu0 %1672, %v953
        %v1674 = vpop.permute.xlu0 %1673
        %v1676 = vmul.f32 %v1550, %v1197
        %v1677 = vmul.f32 %v1554, %v1201
        %v1678 = vmul.f32 %v1558, %v1207
        %v1679 = vmul.f32 %v1562, %v1211
        %v1680 = vmul.f32 %v1566, %v1217
        %v1681 = vmul.f32 %v1570, %v1221
        %v1682 = vmul.f32 %v1574, %v1227
        %v1683 = vmul.f32 %v1578, %v1231
        %v1684 = vmul.f32 %v1582, %v1237
        %v1685 = vmul.f32 %v1586, %v1241
        %v1686 = vmul.f32 %v1590, %v1247
        %v1687 = vmul.f32 %v1594, %v1251
        %v1688 = vmul.f32 %v1598, %v1257
        %v1689 = vmul.f32 %v1602, %v1261
        %v1690 = vmul.f32 %v1606, %v1267
        %v1691 = vmul.f32 %v1610, %v1271
        %v1692 = vmul.f32 %v1614, %v1277
        %v1693 = vmul.f32 %v1618, %v1281
        %v1694 = vmul.f32 %v1622, %v1287
        %v1695 = vmul.f32 %v1626, %v1291
        %v1696 = vmul.f32 %v1630, %v1297
        %v1697 = vmul.f32 %v1634, %v1301
        %v1698 = vmul.f32 %v1638, %v1307
        %v1699 = vmul.f32 %v1642, %v1311
        %v1700 = vmul.f32 %v1646, %v1317
        %v1701 = vmul.f32 %v1650, %v1321
        %v1702 = vmul.f32 %v1654, %v1327
        %v1703 = vmul.f32 %v1658, %v1331
        %v1704 = vmul.f32 %v1662, %v1337
        %v1705 = vmul.f32 %v1666, %v1341
        %v1706 = vmul.f32 %v1670, %v1347
        %v1707 = vmul.f32 %v1674, %v1351
        %1708 = vset.pattern.permute.xlu0 1
        %1709 = vperm.xlu0 %1708, %v844
        %v1710 = vpop.permute.xlu0 %1709
        %1712 = vset.pattern.permute.xlu0 1
        %1713 = vperm.xlu0 %1712, %v847
        %v1714 = vpop.permute.xlu0 %1713
        %1716 = vset.pattern.permute.xlu0 1
        %1717 = vperm.xlu0 %1716, %v852
        %v1718 = vpop.permute.xlu0 %1717
        %1720 = vset.pattern.permute.xlu0 1
        %1721 = vperm.xlu0 %1720, %v855
        %v1722 = vpop.permute.xlu0 %1721
        %1724 = vset.pattern.permute.xlu0 1
        %1725 = vperm.xlu0 %1724, %v860
        %v1726 = vpop.permute.xlu0 %1725
        %1728 = vset.pattern.permute.xlu0 1
        %1729 = vperm.xlu0 %1728, %v863
        %v1730 = vpop.permute.xlu0 %1729
        %1732 = vset.pattern.permute.xlu0 1
        %1733 = vperm.xlu0 %1732, %v868
        %v1734 = vpop.permute.xlu0 %1733
        %1736 = vset.pattern.permute.xlu0 1
        %1737 = vperm.xlu0 %1736, %v871
        %v1738 = vpop.permute.xlu0 %1737
        %1740 = vset.pattern.permute.xlu0 1
        %1741 = vperm.xlu0 %1740, %v876
        %v1742 = vpop.permute.xlu0 %1741
        %1744 = vset.pattern.permute.xlu0 1
        %1745 = vperm.xlu0 %1744, %v879
        %v1746 = vpop.permute.xlu0 %1745
        %1748 = vset.pattern.permute.xlu0 1
        %1749 = vperm.xlu0 %1748, %v884
        %v1750 = vpop.permute.xlu0 %1749
        %1752 = vset.pattern.permute.xlu0 1
        %1753 = vperm.xlu0 %1752, %v887
        %v1754 = vpop.permute.xlu0 %1753
        %1756 = vset.pattern.permute.xlu0 1
        %1757 = vperm.xlu0 %1756, %v892
        %v1758 = vpop.permute.xlu0 %1757
        %1760 = vset.pattern.permute.xlu0 1
        %1761 = vperm.xlu0 %1760, %v895
        %v1762 = vpop.permute.xlu0 %1761
        %1764 = vset.pattern.permute.xlu0 1
        %1765 = vperm.xlu0 %1764, %v900
        %v1766 = vpop.permute.xlu0 %1765
        %1768 = vset.pattern.permute.xlu0 1
        %1769 = vperm.xlu0 %1768, %v903
        %v1770 = vpop.permute.xlu0 %1769
        %1772 = vset.pattern.permute.xlu0 1
        %1773 = vperm.xlu0 %1772, %v923
        %v1774 = vpop.permute.xlu0 %1773
        %1776 = vset.pattern.permute.xlu0 1
        %1777 = vperm.xlu0 %1776, %v925
        %v1778 = vpop.permute.xlu0 %1777
        %1780 = vset.pattern.permute.xlu0 1
        %1781 = vperm.xlu0 %1780, %v927
        %v1782 = vpop.permute.xlu0 %1781
        %1784 = vset.pattern.permute.xlu0 1
        %1785 = vperm.xlu0 %1784, %v929
        %v1786 = vpop.permute.xlu0 %1785
        %1788 = vset.pattern.permute.xlu0 1
        %1789 = vperm.xlu0 %1788, %v931
        %v1790 = vpop.permute.xlu0 %1789
        %1792 = vset.pattern.permute.xlu0 1
        %1793 = vperm.xlu0 %1792, %v933
        %v1794 = vpop.permute.xlu0 %1793
        %1796 = vset.pattern.permute.xlu0 1
        %1797 = vperm.xlu0 %1796, %v935
        %v1798 = vpop.permute.xlu0 %1797
        %1800 = vset.pattern.permute.xlu0 1
        %1801 = vperm.xlu0 %1800, %v937
        %v1802 = vpop.permute.xlu0 %1801
        %1804 = vset.pattern.permute.xlu0 1
        %1805 = vperm.xlu0 %1804, %v939
        %v1806 = vpop.permute.xlu0 %1805
        %1808 = vset.pattern.permute.xlu0 1
        %1809 = vperm.xlu0 %1808, %v941
        %v1810 = vpop.permute.xlu0 %1809
        %1812 = vset.pattern.permute.xlu0 1
        %1813 = vperm.xlu0 %1812, %v943
        %v1814 = vpop.permute.xlu0 %1813
        %1816 = vset.pattern.permute.xlu0 1
        %1817 = vperm.xlu0 %1816, %v945
        %v1818 = vpop.permute.xlu0 %1817
        %1820 = vset.pattern.permute.xlu0 1
        %1821 = vperm.xlu0 %1820, %v947
        %v1822 = vpop.permute.xlu0 %1821
        %1824 = vset.pattern.permute.xlu0 1
        %1825 = vperm.xlu0 %1824, %v949
        %v1826 = vpop.permute.xlu0 %1825
        %1828 = vset.pattern.permute.xlu0 1
        %1829 = vperm.xlu0 %1828, %v951
        %v1830 = vpop.permute.xlu0 %1829
        %1832 = vset.pattern.permute.xlu0 1
        %1833 = vperm.xlu0 %1832, %v953
        %v1834 = vpop.permute.xlu0 %1833
        %v1836 = vmul.f32 %v1710, %v1199
        %v1837 = vmul.f32 %v1714, %v1203
        %v1838 = vmul.f32 %v1718, %v1209
        %v1839 = vmul.f32 %v1722, %v1213
        %v1840 = vmul.f32 %v1726, %v1219
        %v1841 = vmul.f32 %v1730, %v1223
        %v1842 = vmul.f32 %v1734, %v1229
        %v1843 = vmul.f32 %v1738, %v1233
        %v1844 = vmul.f32 %v1742, %v1239
        %v1845 = vmul.f32 %v1746, %v1243
        %v1846 = vmul.f32 %v1750, %v1249
        %v1847 = vmul.f32 %v1754, %v1253
        %v1848 = vmul.f32 %v1758, %v1259
        %v1849 = vmul.f32 %v1762, %v1263
        %v1850 = vmul.f32 %v1766, %v1269
        %v1851 = vmul.f32 %v1770, %v1273
        %v1852 = vmul.f32 %v1774, %v1279
        %v1853 = vmul.f32 %v1778, %v1283
        %v1854 = vmul.f32 %v1782, %v1289
        %v1855 = vmul.f32 %v1786, %v1293
        %v1856 = vmul.f32 %v1790, %v1299
        %v1857 = vmul.f32 %v1794, %v1303
        %v1858 = vmul.f32 %v1798, %v1309
        %v1859 = vmul.f32 %v1802, %v1313
        %v1860 = vmul.f32 %v1806, %v1319
        %v1861 = vmul.f32 %v1810, %v1323
        %v1862 = vmul.f32 %v1814, %v1329
        %v1863 = vmul.f32 %v1818, %v1333
        %v1864 = vmul.f32 %v1822, %v1339
        %v1865 = vmul.f32 %v1826, %v1343
        %v1866 = vmul.f32 %v1830, %v1349
        %v1867 = vmul.f32 %v1834, %v1353
        %v1868 = vadd.f32 %v1676, %v1836
        %v1869 = vadd.f32 %v1677, %v1837
        %v1870 = vadd.f32 %v1678, %v1838
        %v1871 = vadd.f32 %v1679, %v1839
        %v1872 = vadd.f32 %v1680, %v1840
        %v1873 = vadd.f32 %v1681, %v1841
        %v1874 = vadd.f32 %v1682, %v1842
        %v1875 = vadd.f32 %v1683, %v1843
        %v1876 = vadd.f32 %v1684, %v1844
        %v1877 = vadd.f32 %v1685, %v1845
        %v1878 = vadd.f32 %v1686, %v1846
        %v1879 = vadd.f32 %v1687, %v1847
        %v1880 = vadd.f32 %v1688, %v1848
        %v1881 = vadd.f32 %v1689, %v1849
        %v1882 = vadd.f32 %v1690, %v1850
        %v1883 = vadd.f32 %v1691, %v1851
        %v1884 = vadd.f32 %v1692, %v1852
        %v1885 = vadd.f32 %v1693, %v1853
        %v1886 = vadd.f32 %v1694, %v1854
        %v1887 = vadd.f32 %v1695, %v1855
        %v1888 = vadd.f32 %v1696, %v1856
        %v1889 = vadd.f32 %v1697, %v1857
        %v1890 = vadd.f32 %v1698, %v1858
        %v1891 = vadd.f32 %v1699, %v1859
        %v1892 = vadd.f32 %v1700, %v1860
        %v1893 = vadd.f32 %v1701, %v1861
        %v1894 = vadd.f32 %v1702, %v1862
        %v1895 = vadd.f32 %v1703, %v1863
        %v1896 = vadd.f32 %v1704, %v1864
        %v1897 = vadd.f32 %v1705, %v1865
        %v1898 = vadd.f32 %v1706, %v1866
        %v1899 = vadd.f32 %v1707, %v1867
        %1900 = vset.pattern.permute.xlu0 2
        %1901 = vperm.xlu0 %1900, %v844
        %v1902 = vpop.permute.xlu0 %1901
        %1904 = vset.pattern.permute.xlu0 2
        %1905 = vperm.xlu0 %1904, %v847
        %v1906 = vpop.permute.xlu0 %1905
        %1908 = vset.pattern.permute.xlu0 2
        %1909 = vperm.xlu0 %1908, %v852
        %v1910 = vpop.permute.xlu0 %1909
        %1912 = vset.pattern.permute.xlu0 2
        %1913 = vperm.xlu0 %1912, %v855
        %v1914 = vpop.permute.xlu0 %1913
        %1916 = vset.pattern.permute.xlu0 2
        %1917 = vperm.xlu0 %1916, %v860
        %v1918 = vpop.permute.xlu0 %1917
        %1920 = vset.pattern.permute.xlu0 2
        %1921 = vperm.xlu0 %1920, %v863
        %v1922 = vpop.permute.xlu0 %1921
        %1924 = vset.pattern.permute.xlu0 2
        %1925 = vperm.xlu0 %1924, %v868
        %v1926 = vpop.permute.xlu0 %1925
        %1928 = vset.pattern.permute.xlu0 2
        %1929 = vperm.xlu0 %1928, %v871
        %v1930 = vpop.permute.xlu0 %1929
        %1932 = vset.pattern.permute.xlu0 2
        %1933 = vperm.xlu0 %1932, %v876
        %v1934 = vpop.permute.xlu0 %1933
        %1936 = vset.pattern.permute.xlu0 2
        %1937 = vperm.xlu0 %1936, %v879
        %v1938 = vpop.permute.xlu0 %1937
        %1940 = vset.pattern.permute.xlu0 2
        %1941 = vperm.xlu0 %1940, %v884
        %v1942 = vpop.permute.xlu0 %1941
        %1944 = vset.pattern.permute.xlu0 2
        %1945 = vperm.xlu0 %1944, %v887
        %v1946 = vpop.permute.xlu0 %1945
        %1948 = vset.pattern.permute.xlu0 2
        %1949 = vperm.xlu0 %1948, %v892
        %v1950 = vpop.permute.xlu0 %1949
        %1952 = vset.pattern.permute.xlu0 2
        %1953 = vperm.xlu0 %1952, %v895
        %v1954 = vpop.permute.xlu0 %1953
        %1956 = vset.pattern.permute.xlu0 2
        %1957 = vperm.xlu0 %1956, %v900
        %v1958 = vpop.permute.xlu0 %1957
        %1960 = vset.pattern.permute.xlu0 2
        %1961 = vperm.xlu0 %1960, %v903
        %v1962 = vpop.permute.xlu0 %1961
        %1964 = vset.pattern.permute.xlu0 2
        %1965 = vperm.xlu0 %1964, %v923
        %v1966 = vpop.permute.xlu0 %1965
        %1968 = vset.pattern.permute.xlu0 2
        %1969 = vperm.xlu0 %1968, %v925
        %v1970 = vpop.permute.xlu0 %1969
        %1972 = vset.pattern.permute.xlu0 2
        %1973 = vperm.xlu0 %1972, %v927
        %v1974 = vpop.permute.xlu0 %1973
        %1976 = vset.pattern.permute.xlu0 2
        %1977 = vperm.xlu0 %1976, %v929
        %v1978 = vpop.permute.xlu0 %1977
        %1980 = vset.pattern.permute.xlu0 2
        %1981 = vperm.xlu0 %1980, %v931
        %v1982 = vpop.permute.xlu0 %1981
        %1984 = vset.pattern.permute.xlu0 2
        %1985 = vperm.xlu0 %1984, %v933
        %v1986 = vpop.permute.xlu0 %1985
        %1988 = vset.pattern.permute.xlu0 2
        %1989 = vperm.xlu0 %1988, %v935
        %v1990 = vpop.permute.xlu0 %1989
        %1992 = vset.pattern.permute.xlu0 2
        %1993 = vperm.xlu0 %1992, %v937
        %v1994 = vpop.permute.xlu0 %1993
        %1996 = vset.pattern.permute.xlu0 2
        %1997 = vperm.xlu0 %1996, %v939
        %v1998 = vpop.permute.xlu0 %1997
        %2000 = vset.pattern.permute.xlu0 2
        %2001 = vperm.xlu0 %2000, %v941
        %v2002 = vpop.permute.xlu0 %2001
        %2004 = vset.pattern.permute.xlu0 2
        %2005 = vperm.xlu0 %2004, %v943
        %v2006 = vpop.permute.xlu0 %2005
        %2008 = vset.pattern.permute.xlu0 2
        %2009 = vperm.xlu0 %2008, %v945
        %v2010 = vpop.permute.xlu0 %2009
        %2012 = vset.pattern.permute.xlu0 2
        %2013 = vperm.xlu0 %2012, %v947
        %v2014 = vpop.permute.xlu0 %2013
        %2016 = vset.pattern.permute.xlu0 2
        %2017 = vperm.xlu0 %2016, %v949
        %v2018 = vpop.permute.xlu0 %2017
        %2020 = vset.pattern.permute.xlu0 2
        %2021 = vperm.xlu0 %2020, %v951
        %v2022 = vpop.permute.xlu0 %2021
        %2024 = vset.pattern.permute.xlu0 2
        %2025 = vperm.xlu0 %2024, %v953
        %v2026 = vpop.permute.xlu0 %2025
        %v2028 = vmul.f32 %v1902, %v1390
        %v2029 = vmul.f32 %v1906, %v1394
        %v2030 = vmul.f32 %v1910, %v1400
        %v2031 = vmul.f32 %v1914, %v1404
        %v2032 = vmul.f32 %v1918, %v1410
        %v2033 = vmul.f32 %v1922, %v1414
        %v2034 = vmul.f32 %v1926, %v1420
        %v2035 = vmul.f32 %v1930, %v1424
        %v2036 = vmul.f32 %v1934, %v1430
        %v2037 = vmul.f32 %v1938, %v1434
        %v2038 = vmul.f32 %v1942, %v1440
        %v2039 = vmul.f32 %v1946, %v1444
        %v2040 = vmul.f32 %v1950, %v1450
        %v2041 = vmul.f32 %v1954, %v1454
        %v2042 = vmul.f32 %v1958, %v1460
        %v2043 = vmul.f32 %v1962, %v1464
        %v2044 = vmul.f32 %v1966, %v1470
        %v2045 = vmul.f32 %v1970, %v1474
        %v2046 = vmul.f32 %v1974, %v1480
        %v2047 = vmul.f32 %v1978, %v1484
        %v2048 = vmul.f32 %v1982, %v1490
        %v2049 = vmul.f32 %v1986, %v1494
        %v2050 = vmul.f32 %v1990, %v1500
        %v2051 = vmul.f32 %v1994, %v1504
        %v2052 = vmul.f32 %v1998, %v1510
        %v2053 = vmul.f32 %v2002, %v1514
        %v2054 = vmul.f32 %v2006, %v1520
        %v2055 = vmul.f32 %v2010, %v1524
        %v2056 = vmul.f32 %v2014, %v1530
        %v2057 = vmul.f32 %v2018, %v1534
        %v2058 = vmul.f32 %v2022, %v1540
        %v2059 = vmul.f32 %v2026, %v1544
        %v2060 = vadd.f32 %v1868, %v2028
        %v2061 = vadd.f32 %v1869, %v2029
        %v2062 = vadd.f32 %v1870, %v2030
        %v2063 = vadd.f32 %v1871, %v2031
        %v2064 = vadd.f32 %v1872, %v2032
        %v2065 = vadd.f32 %v1873, %v2033
        %v2066 = vadd.f32 %v1874, %v2034
        %v2067 = vadd.f32 %v1875, %v2035
        %v2068 = vadd.f32 %v1876, %v2036
        %v2069 = vadd.f32 %v1877, %v2037
        %v2070 = vadd.f32 %v1878, %v2038
        %v2071 = vadd.f32 %v1879, %v2039
        %v2072 = vadd.f32 %v1880, %v2040
        %v2073 = vadd.f32 %v1881, %v2041
        %v2074 = vadd.f32 %v1882, %v2042
        %v2075 = vadd.f32 %v1883, %v2043
        %v2076 = vadd.f32 %v1884, %v2044
        %v2077 = vadd.f32 %v1885, %v2045
        %v2078 = vadd.f32 %v1886, %v2046
        %v2079 = vadd.f32 %v1887, %v2047
        %v2080 = vadd.f32 %v1888, %v2048
        %v2081 = vadd.f32 %v1889, %v2049
        %v2082 = vadd.f32 %v1890, %v2050
        %v2083 = vadd.f32 %v1891, %v2051
        %v2084 = vadd.f32 %v1892, %v2052
        %v2085 = vadd.f32 %v1893, %v2053
        %v2086 = vadd.f32 %v1894, %v2054
        %v2087 = vadd.f32 %v1895, %v2055
        %v2088 = vadd.f32 %v1896, %v2056
        %v2089 = vadd.f32 %v1897, %v2057
        %v2090 = vadd.f32 %v1898, %v2058
        %v2091 = vadd.f32 %v1899, %v2059
        %2092 = vset.pattern.permute.xlu0 3
        %2093 = vperm.xlu0 %2092, %v844
        %v2094 = vpop.permute.xlu0 %2093
        %2096 = vset.pattern.permute.xlu0 3
        %2097 = vperm.xlu0 %2096, %v847
        %v2098 = vpop.permute.xlu0 %2097
        %2100 = vset.pattern.permute.xlu0 3
        %2101 = vperm.xlu0 %2100, %v852
        %v2102 = vpop.permute.xlu0 %2101
        %2104 = vset.pattern.permute.xlu0 3
        %2105 = vperm.xlu0 %2104, %v855
        %v2106 = vpop.permute.xlu0 %2105
        %2108 = vset.pattern.permute.xlu0 3
        %2109 = vperm.xlu0 %2108, %v860
        %v2110 = vpop.permute.xlu0 %2109
        %2112 = vset.pattern.permute.xlu0 3
        %2113 = vperm.xlu0 %2112, %v863
        %v2114 = vpop.permute.xlu0 %2113
        %2116 = vset.pattern.permute.xlu0 3
        %2117 = vperm.xlu0 %2116, %v868
        %v2118 = vpop.permute.xlu0 %2117
        %2120 = vset.pattern.permute.xlu0 3
        %2121 = vperm.xlu0 %2120, %v871
        %v2122 = vpop.permute.xlu0 %2121
        %2124 = vset.pattern.permute.xlu0 3
        %2125 = vperm.xlu0 %2124, %v876
        %v2126 = vpop.permute.xlu0 %2125
        %2128 = vset.pattern.permute.xlu0 3
        %2129 = vperm.xlu0 %2128, %v879
        %v2130 = vpop.permute.xlu0 %2129
        %2132 = vset.pattern.permute.xlu0 3
        %2133 = vperm.xlu0 %2132, %v884
        %v2134 = vpop.permute.xlu0 %2133
        %2136 = vset.pattern.permute.xlu0 3
        %2137 = vperm.xlu0 %2136, %v887
        %v2138 = vpop.permute.xlu0 %2137
        %2140 = vset.pattern.permute.xlu0 3
        %2141 = vperm.xlu0 %2140, %v892
        %v2142 = vpop.permute.xlu0 %2141
        %2144 = vset.pattern.permute.xlu0 3
        %2145 = vperm.xlu0 %2144, %v895
        %v2146 = vpop.permute.xlu0 %2145
        %2148 = vset.pattern.permute.xlu0 3
        %2149 = vperm.xlu0 %2148, %v900
        %v2150 = vpop.permute.xlu0 %2149
        %2152 = vset.pattern.permute.xlu0 3
        %2153 = vperm.xlu0 %2152, %v903
        %v2154 = vpop.permute.xlu0 %2153
        %2156 = vset.pattern.permute.xlu0 3
        %2157 = vperm.xlu0 %2156, %v923
        %v2158 = vpop.permute.xlu0 %2157
        %2160 = vset.pattern.permute.xlu0 3
        %2161 = vperm.xlu0 %2160, %v925
        %v2162 = vpop.permute.xlu0 %2161
        %2164 = vset.pattern.permute.xlu0 3
        %2165 = vperm.xlu0 %2164, %v927
        %v2166 = vpop.permute.xlu0 %2165
        %2168 = vset.pattern.permute.xlu0 3
        %2169 = vperm.xlu0 %2168, %v929
        %v2170 = vpop.permute.xlu0 %2169
        %2172 = vset.pattern.permute.xlu0 3
        %2173 = vperm.xlu0 %2172, %v931
        %v2174 = vpop.permute.xlu0 %2173
        %2176 = vset.pattern.permute.xlu0 3
        %2177 = vperm.xlu0 %2176, %v933
        %v2178 = vpop.permute.xlu0 %2177
        %2180 = vset.pattern.permute.xlu0 3
        %2181 = vperm.xlu0 %2180, %v935
        %v2182 = vpop.permute.xlu0 %2181
        %2184 = vset.pattern.permute.xlu0 3
        %2185 = vperm.xlu0 %2184, %v937
        %v2186 = vpop.permute.xlu0 %2185
        %2188 = vset.pattern.permute.xlu0 3
        %2189 = vperm.xlu0 %2188, %v939
        %v2190 = vpop.permute.xlu0 %2189
        %2192 = vset.pattern.permute.xlu0 3
        %2193 = vperm.xlu0 %2192, %v941
        %v2194 = vpop.permute.xlu0 %2193
        %2196 = vset.pattern.permute.xlu0 3
        %2197 = vperm.xlu0 %2196, %v943
        %v2198 = vpop.permute.xlu0 %2197
        %2200 = vset.pattern.permute.xlu0 3
        %2201 = vperm.xlu0 %2200, %v945
        %v2202 = vpop.permute.xlu0 %2201
        %2204 = vset.pattern.permute.xlu0 3
        %2205 = vperm.xlu0 %2204, %v947
        %v2206 = vpop.permute.xlu0 %2205
        %2208 = vset.pattern.permute.xlu0 3
        %2209 = vperm.xlu0 %2208, %v949
        %v2210 = vpop.permute.xlu0 %2209
        %2212 = vset.pattern.permute.xlu0 3
        %2213 = vperm.xlu0 %2212, %v951
        %v2214 = vpop.permute.xlu0 %2213
        %2216 = vset.pattern.permute.xlu0 3
        %2217 = vperm.xlu0 %2216, %v953
        %v2218 = vpop.permute.xlu0 %2217
        %v2220 = vmul.f32 %v2094, %v1392
        %v2221 = vmul.f32 %v2098, %v1396
        %v2222 = vmul.f32 %v2102, %v1402
        %v2223 = vmul.f32 %v2106, %v1406
        %v2224 = vmul.f32 %v2110, %v1412
        %v2225 = vmul.f32 %v2114, %v1416
        %v2226 = vmul.f32 %v2118, %v1422
        %v2227 = vmul.f32 %v2122, %v1426
        %v2228 = vmul.f32 %v2126, %v1432
        %v2229 = vmul.f32 %v2130, %v1436
        %v2230 = vmul.f32 %v2134, %v1442
        %v2231 = vmul.f32 %v2138, %v1446
        %v2232 = vmul.f32 %v2142, %v1452
        %v2233 = vmul.f32 %v2146, %v1456
        %v2234 = vmul.f32 %v2150, %v1462
        %v2235 = vmul.f32 %v2154, %v1466
        %v2236 = vmul.f32 %v2158, %v1472
        %v2237 = vmul.f32 %v2162, %v1476
        %v2238 = vmul.f32 %v2166, %v1482
        %v2239 = vmul.f32 %v2170, %v1486
        %v2240 = vmul.f32 %v2174, %v1492
        %v2241 = vmul.f32 %v2178, %v1496
        %v2242 = vmul.f32 %v2182, %v1502
        %v2243 = vmul.f32 %v2186, %v1506
        %v2244 = vmul.f32 %v2190, %v1512
        %v2245 = vmul.f32 %v2194, %v1516
        %v2246 = vmul.f32 %v2198, %v1522
        %v2247 = vmul.f32 %v2202, %v1526
        %v2248 = vmul.f32 %v2206, %v1532
        %v2249 = vmul.f32 %v2210, %v1536
        %v2250 = vmul.f32 %v2214, %v1542
        %v2251 = vmul.f32 %v2218, %v1546
        %v2252 = vadd.f32 %v2060, %v2220
        %v2253 = vadd.f32 %v2061, %v2221
        %v2254 = vadd.f32 %v2062, %v2222
        %v2255 = vadd.f32 %v2063, %v2223
        %v2256 = vadd.f32 %v2064, %v2224
        %v2257 = vadd.f32 %v2065, %v2225
        %v2258 = vadd.f32 %v2066, %v2226
        %v2259 = vadd.f32 %v2067, %v2227
        %v2260 = vadd.f32 %v2068, %v2228
        %v2261 = vadd.f32 %v2069, %v2229
        %v2262 = vadd.f32 %v2070, %v2230
        %v2263 = vadd.f32 %v2071, %v2231
        %v2264 = vadd.f32 %v2072, %v2232
        %v2265 = vadd.f32 %v2073, %v2233
        %v2266 = vadd.f32 %v2074, %v2234
        %v2267 = vadd.f32 %v2075, %v2235
        %v2268 = vadd.f32 %v2076, %v2236
        %v2269 = vadd.f32 %v2077, %v2237
        %v2270 = vadd.f32 %v2078, %v2238
        %v2271 = vadd.f32 %v2079, %v2239
        %v2272 = vadd.f32 %v2080, %v2240
        %v2273 = vadd.f32 %v2081, %v2241
        %v2274 = vadd.f32 %v2082, %v2242
        %v2275 = vadd.f32 %v2083, %v2243
        %v2276 = vadd.f32 %v2084, %v2244
        %v2277 = vadd.f32 %v2085, %v2245
        %v2278 = vadd.f32 %v2086, %v2246
        %v2279 = vadd.f32 %v2087, %v2247
        %v2280 = vadd.f32 %v2088, %v2248
        %v2281 = vadd.f32 %v2089, %v2249
        %v2282 = vadd.f32 %v2090, %v2250
        %v2283 = vadd.f32 %v2091, %v2251
        %v2284 = vld [vmem:[%s496] sm:$0xf]
        %v2285 = vld [vmem:[%s496 + $0x4] sm:$0xf]
        %v2286 = vld [vmem:[%s496 + $0x8] sm:$0xf]
        %v2287 = vld [vmem:[%s496 + $0xc] sm:$0xf]
        %v2288 = vld [vmem:[%s496 + $0x10] sm:$0xf]
        %v2289 = vld [vmem:[%s496 + $0x14] sm:$0xf]
        %v2290 = vld [vmem:[%s496 + $0x18] sm:$0xf]
        %v2291 = vld [vmem:[%s496 + $0x1c] sm:$0xf]
        %v2292 = vld [vmem:[%s503] sm:$0xf]
        %v2293 = vld [vmem:[%s503 + $0x4] sm:$0xf]
        %v2294 = vld [vmem:[%s503 + $0x8] sm:$0xf]
        %v2295 = vld [vmem:[%s503 + $0xc] sm:$0xf]
        %v2296 = vld [vmem:[%s503 + $0x10] sm:$0xf]
        %v2297 = vld [vmem:[%s503 + $0x14] sm:$0xf]
        %v2298 = vld [vmem:[%s503 + $0x18] sm:$0xf]
        %v2299 = vld [vmem:[%s503 + $0x1c] sm:$0xf]
        %v2308 = vunpack.c.l.b16 %v2284
        %v2309 = vunpack.c.l.b16 %v2285
        %v2310 = vunpack.c.l.b16 %v2286
        %v2311 = vunpack.c.l.b16 %v2287
        %v2312 = vunpack.c.l.b16 %v2288
        %v2313 = vunpack.c.l.b16 %v2289
        %v2314 = vunpack.c.l.b16 %v2290
        %v2315 = vunpack.c.l.b16 %v2291
        %v2316 = vpack.c.b16 %v2309, %v2308
        %v2317 = vpack.c.b16 %v2311, %v2310
        %v2318 = vpack.c.b16 %v2313, %v2312
        %v2319 = vpack.c.b16 %v2315, %v2314
        %v2332 = vunpack.c.l.b16 %v2292
        %v2333 = vunpack.c.l.b16 %v2293
        %v2334 = vunpack.c.l.b16 %v2294
        %v2335 = vunpack.c.l.b16 %v2295
        %v2336 = vunpack.c.l.b16 %v2296
        %v2337 = vunpack.c.l.b16 %v2297
        %v2338 = vunpack.c.l.b16 %v2298
        %v2339 = vunpack.c.l.b16 %v2299
        %v2340 = vpack.c.b16 %v2333, %v2332
        %v2341 = vpack.c.b16 %v2335, %v2334
        %v2342 = vpack.c.b16 %v2337, %v2336
        %v2343 = vpack.c.b16 %v2339, %v2338
        %v2348 = vld [vmem:[#allocation4] sm:$0xff]
        %v2349 = vld [vmem:[#allocation4 + $0x8] sm:$0xff]
        %v2350 = vld [vmem:[#allocation4 + $0x10] sm:$0xff]
        %v2351 = vld [vmem:[#allocation4 + $0x18] sm:$0xff]
        %v2352 = vld [vmem:[#allocation4 + $0x20] sm:$0xff]
        %v2353 = vld [vmem:[#allocation4 + $0x28] sm:$0xff]
        %v2354 = vld [vmem:[#allocation4 + $0x30] sm:$0xff]
        %v2355 = vld [vmem:[#allocation4 + $0x38] sm:$0xff]
        %v2356 = vpack.c.bf16 %v2253, %v2252
        %v2357 = vpack.c.bf16 %v2255, %v2254
        %v2358 = vpack.c.bf16 %v2257, %v2256
        %v2359 = vpack.c.bf16 %v2259, %v2258
        %v2360 = vpack.c.bf16 %v2261, %v2260
        %v2361 = vpack.c.bf16 %v2263, %v2262
        %v2362 = vpack.c.bf16 %v2265, %v2264
        %v2363 = vpack.c.bf16 %v2267, %v2266
        %v2364 = vpack.c.bf16 %v2269, %v2268
        %v2365 = vpack.c.bf16 %v2271, %v2270
        %v2366 = vpack.c.bf16 %v2273, %v2272
        %v2367 = vpack.c.bf16 %v2275, %v2274
        %v2368 = vpack.c.bf16 %v2277, %v2276
        %v2369 = vpack.c.bf16 %v2279, %v2278
        %v2370 = vpack.c.bf16 %v2281, %v2280
        %v2371 = vpack.c.bf16 %v2283, %v2282
        %2372 = vmatprep.subr.bf16.mxu0 0
        %2373 = vmatpush1.bf16.msra.mxu0 %v2356
        %2374 = vmatprep.subr.bf16.mxu0 0
        %2375 = vmatpush1.bf16.msra.mxu0 %v2357
        %2376 = vmatprep.subr.bf16.mxu0 0
        %2377 = vmatpush1.bf16.msra.mxu0 %v2358
        %2378 = vmatprep.subr.bf16.mxu0 0
        %2379 = vmatpush1.bf16.msra.mxu0 %v2359
        %2380 = vmatprep.subr.bf16.mxu0 0
        %2381 = vmatpush1.bf16.msra.mxu0 %v2360
        %2382 = vmatprep.subr.bf16.mxu0 0
        %2383 = vmatpush1.bf16.msra.mxu0 %v2361
        %2384 = vmatprep.subr.bf16.mxu0 0
        %2385 = vmatpush1.bf16.msra.mxu0 %v2362
        %2386 = vmatprep.subr.bf16.mxu0 0
        %2387 = vmatpush1.bf16.msra.mxu0 %v2363
        %2388 = vmatprep.subr.bf16.mxu0 0
        %2389 = vmatpush1.bf16.msra.mxu0 %v2364
        %2390 = vmatprep.subr.bf16.mxu0 0
        %2391 = vmatpush1.bf16.msra.mxu0 %v2365
        %2392 = vmatprep.subr.bf16.mxu0 0
        %2393 = vmatpush1.bf16.msra.mxu0 %v2366
        %2394 = vmatprep.subr.bf16.mxu0 0
        %2395 = vmatpush1.bf16.msra.mxu0 %v2367
        %2396 = vmatprep.subr.bf16.mxu0 0
        %2397 = vmatpush1.bf16.msra.mxu0 %v2368
        %2398 = vmatprep.subr.bf16.mxu0 0
        %2399 = vmatpush1.bf16.msra.mxu0 %v2369
        %2400 = vmatprep.subr.bf16.mxu0 0
        %2401 = vmatpush1.bf16.msra.mxu0 %v2370
        %2402 = vmatprep.subr.bf16.mxu0 0
        %2403 = vmatpush1.bf16.msra.mxu0 %v2371
        %2404 = vmatprep.mubr.bf16.mxu0 %v2340
        %2405 = vmatmul.mubr.bf16.gmra.mrb[0].mxu0 %v2316
        %v2406 = vpop.f32.mrb[0].mxu0
        %v2407 = vadd.f32 0.0, %v2406
        %v2408 = vpop.f32.mrb[0].mxu0
        %v2409 = vpop.f32.mrb[0].mxu0
        %v2410 = vadd.f32 0.0, %v2409
        %v2411 = vpop.f32.mrb[0].mxu0
        %2412 = vmatprep.mubr.bf16.mxu0 %v2341
        %2413 = vmatmul.mubr.bf16.gmra.mrb[0].mxu0 %v2317
        %v2414 = vpop.f32.mrb[0].mxu0
        %v2415 = vadd.f32 0.0, %v2414
        %v2416 = vpop.f32.mrb[0].mxu0
        %v2417 = vpop.f32.mrb[0].mxu0
        %v2418 = vadd.f32 0.0, %v2417
        %v2419 = vpop.f32.mrb[0].mxu0
        %2420 = vmatprep.mubr.bf16.mxu0 %v2342
        %2421 = vmatmul.mubr.bf16.gmra.mrb[0].mxu0 %v2318
        %v2422 = vpop.f32.mrb[0].mxu0
        %v2423 = vadd.f32 0.0, %v2422
        %v2424 = vpop.f32.mrb[0].mxu0
        %v2425 = vpop.f32.mrb[0].mxu0
        %v2426 = vadd.f32 0.0, %v2425
        %v2427 = vpop.f32.mrb[0].mxu0
        %2428 = vmatprep.mubr.bf16.mxu0 %v2343
        %2429 = vmatmul.mubr.bf16.gmra.mrb[0].mxu0 %v2319
        %v2430 = vpop.f32.mrb[0].mxu0
        %v2431 = vadd.f32 0.0, %v2430
        %v2432 = vpop.f32.mrb[0].mxu0
        %v2433 = vpop.f32.mrb[0].mxu0
        %v2434 = vadd.f32 0.0, %v2433
        %v2435 = vpop.f32.mrb[0].mxu0
        %2436 = vdwg.mxu0
        %v2437 = vadd.f32 %v2348, %v2407
        %v2438 = vadd.f32 %v2349, %v2410
        %v2439 = vadd.f32 %v2350, %v2415
        %v2440 = vadd.f32 %v2351, %v2418
        %v2441 = vadd.f32 %v2352, %v2423
        %v2442 = vadd.f32 %v2353, %v2426
        %v2443 = vadd.f32 %v2354, %v2431
        %v2444 = vadd.f32 %v2355, %v2434
        %2445 = vst [vmem:[#allocation4] sm:$0xff] %v2437
        %2446 = vst [vmem:[#allocation4 + $0x8] sm:$0xff] %v2438
        %2447 = vst [vmem:[#allocation4 + $0x10] sm:$0xff] %v2439
        %2448 = vst [vmem:[#allocation4 + $0x18] sm:$0xff] %v2440
        %2449 = vst [vmem:[#allocation4 + $0x20] sm:$0xff] %v2441
        %2450 = vst [vmem:[#allocation4 + $0x28] sm:$0xff] %v2442
        %2451 = vst [vmem:[#allocation4 + $0x30] sm:$0xff] %v2443
        %2452 = vst [vmem:[#allocation4 + $0x38] sm:$0xff] %v2444
        %p2453 = scmp.eq.s32.totalorder %s22, 1
        // Predicated region
        $region147: #{tpu_custom_call.1} parent=133 // pred_check
          %p2454 = pneg %p2453
        $region148: #{tpu_custom_call.1} parent=133 // pred_check_branch
          %2456 = sbr.rel (%p2454) target = $region150
        $region149: #{tpu_custom_call.1} parent=133 // pred_region
          %v2457 = vld [vmem:[#allocation4] sm:$0xff]
          %v2458 = vld [vmem:[#allocation4 + $0x8] sm:$0xff]
          %v2459 = vld [vmem:[#allocation4 + $0x10] sm:$0xff]
          %v2460 = vld [vmem:[#allocation4 + $0x18] sm:$0xff]
          %v2461 = vld [vmem:[#allocation4 + $0x20] sm:$0xff]
          %v2462 = vld [vmem:[#allocation4 + $0x28] sm:$0xff]
          %v2463 = vld [vmem:[#allocation4 + $0x30] sm:$0xff]
          %v2464 = vld [vmem:[#allocation4 + $0x38] sm:$0xff]
          %v2465 = vmax.f32 %v2457, 0.0
          %v2466 = vmax.f32 %v2458, 0.0
          %v2467 = vmax.f32 %v2459, 0.0
          %v2468 = vmax.f32 %v2460, 0.0
          %v2469 = vmax.f32 %v2461, 0.0
          %v2470 = vmax.f32 %v2462, 0.0
          %v2471 = vmax.f32 %v2463, 0.0
          %v2472 = vmax.f32 %v2464, 0.0
          %2473 = vst [vmem:[#allocation4] sm:$0xff] %v2465
          %2474 = vst [vmem:[#allocation4 + $0x8] sm:$0xff] %v2466
          %2475 = vst [vmem:[#allocation4 + $0x10] sm:$0xff] %v2467
          %2476 = vst [vmem:[#allocation4 + $0x18] sm:$0xff] %v2468
          %2477 = vst [vmem:[#allocation4 + $0x20] sm:$0xff] %v2469
          %2478 = vst [vmem:[#allocation4 + $0x28] sm:$0xff] %v2470
          %2479 = vst [vmem:[#allocation4 + $0x30] sm:$0xff] %v2471
          %2480 = vst [vmem:[#allocation4 + $0x38] sm:$0xff] %v2472
        $region150: #{tpu_custom_call.1} parent=133 // pred_fallthru
          _
        // Predicated region
        $region151: #{tpu_custom_call.1} parent=133 // pred_check
          %p2481 = pneg %p270
        $region152: #{tpu_custom_call.1} parent=133 // pred_check_branch
          %2483 = sbr.rel (%p2481) target = $region154
        $region153: #{tpu_custom_call.1} parent=133 // pred_region
          %s2485 = ssub.s32 1024, 1024
          %2486 = vsyncadd [#allocation5], %s2485
          %s2487 = sshll.u32 [#allocation4], 4
          %s2488 = int_to_ptr.vmem [resolvable:$true] %s2487
          %2493 = dma.vmem_to_hbm [thread:$0]  %s2488, 1024, %s10, [#allocation5], 128, 128, 8
        $region154: #{tpu_custom_call.1} parent=133 // pred_fallthru
          _
        // Predicated region
        $region155: #{tpu_custom_call.1} parent=133 // pred_check
          %p2494 = pneg %p270
        $region156: #{tpu_custom_call.1} parent=133 // pred_check_branch
          %2496 = sbr.rel (%p2494) target = $region158
        $region157: #{tpu_custom_call.1} parent=133 // pred_region
          %2497 = dma.done [#allocation5], 1024
        $region158: #{tpu_custom_call.1} parent=133 // pred_fallthru
          _
      $region134: #{tpu_custom_call.1} parent=5 // pred_fallthru
        _
      %p2498 = scmp.le.s32.totalorder 2, %s17
      // Predicated region
      $region159: #{tpu_custom_call.1} parent=5 // pred_check
        %p2499 = pneg %p2498
      $region160: #{tpu_custom_call.1} parent=5 // pred_check_branch
        %2501 = sbr.rel (%p2499) target = $region162
      $region161: #{tpu_custom_call.1} parent=5 // pred_region
        %s2502 = ssub.s32 %s17, 2
      $region162: #{tpu_custom_call.1} parent=5 // pred_fallthru
        _
    $region6: #{tpu_custom_call.1} parent=1 // loop_footer
      %s21 = sadd.s32 1, %s17
    $region7: #{tpu_custom_call.1} parent=1 // loop_footer_branch
      %16 = sbr.rel target = $region3
    $region8: #{tpu_custom_call.1} parent=1 // loop_exit
      _
    %2503 = vsyncpa [#allocation5], 1
    %s2504 = scalar_lea.sflag [#allocation5], 1
    %2505 = vsyncpa %s2504, 1

</llo_original>
